<compile_context>
chip_gen: v5e
topology: v5e:2x2
jax: 0.10.0
libtpu: 0.0.40
codegen_flags: <defaults>
</compile_context>

<pallas_src>
from functools import partial

import jax
import jax.numpy as jnp
from jax.experimental import pallas as pl
from jax.experimental.pallas import tpu as pltpu

EPS = 1e-5

_VMEM_LIMIT_CACHE = None


def _vmem_limit_bytes():
    """Generation-aware scoped-VMEM budget (v7x: 64 MiB phys, v5e/v6e: 128 MiB)."""
    global _VMEM_LIMIT_CACHE
    if _VMEM_LIMIT_CACHE is None:
        cap = 128 * 1024 * 1024
        try:
            cap = int(getattr(pltpu.get_tpu_info(), "vmem_capacity_bytes", cap))
        except Exception:
            pass
        _VMEM_LIMIT_CACHE = int(min(max(cap * 3 // 4, 32 * 1024 * 1024),
                                    96 * 1024 * 1024))
    return _VMEM_LIMIT_CACHE


def _round_up(v, m):
    return ((v + m - 1) // m) * m


def _pick_lane_tile(m):
    """Largest lane tile <= 1024 dividing m (m is always a multiple of 128)."""
    for t in (1024, 896, 768, 640, 512, 384, 256, 128):
        if m % t == 0:
            return t
    return m


def _pick_cout_tile(cout):
    """Cout tile: a multiple of 128 when possible (second parallel grid axis)."""
    for t in (256, 128):
        if cout > t and cout % t == 0:
            return t
    return cout


# ---------------------------------------------------------------------------
# Kernels
# ---------------------------------------------------------------------------
def bn_stats_kernel(x_ref, sum_ref, ssq_ref):
    """Per-channel sum / sum-of-squares, accumulated over the N grid axis."""
    @pl.when(pl.program_id(0) == 0)
    def _():
        sum_ref[...] = jnp.zeros_like(sum_ref)
        ssq_ref[...] = jnp.zeros_like(ssq_ref)

    x = x_ref[0]                                       # (C, M), spatial on lanes
    sum_ref[...] += jnp.sum(x, axis=1, keepdims=True)
    ssq_ref[...] += jnp.sum(x * x, axis=1, keepdims=True)


def fused_conv_kernel(x_ref, scale_ref, shift_ref, mask_ref, *refs,
                      taps, tm, n_tiles, with_shortcut, with_stats):
    """Fused [BN affine -> ReLU -> 3x3 conv] (+ raw-path shortcut conv, + BN1 stats).

    x_ref: (1, P, Cin, L) flat (phase-decomposed for stride 2) image, P in {1, 4}.
    taps:  9 static (phase, lane_offset) pairs; tap t matches weight column block t.
    Output tiles are written lane-dense, TM (a multiple of 128) lanes at a time.
    """
    refs = list(refs)
    omask_ref = refs.pop(0) if with_stats else None
    w_ref = refs.pop(0)
    ws_ref = refs.pop(0) if with_shortcut else None
    o_ref = refs.pop(0)
    osc_ref = refs.pop(0) if with_shortcut else None
    sum_ref = ssq_ref = None
    if with_stats:
        sum_ref, ssq_ref = refs

    x = x_ref[0]                                       # (P, Cin, L)
    # BN affine + ReLU prologue; the mask zeroes every non-image (pad) position
    # so the affine shift never leaks into the convolution.
    y = jnp.maximum(x * scale_ref[...] + shift_ref[...], 0.0) * mask_ref[...]

    w = w_ref[...]                                     # (TCout, 9*Cin)
    ws = ws_ref[...] if with_shortcut else None

    s_tot = q_tot = None
    for ti in range(n_tiles):                          # static unroll over lane tiles
        m0 = ti * tm
        # In-VMEM im2col: gather the 9 shifted taps into one contiguous K axis
        # and issue a SINGLE big-K MXU dot per tile (no per-tap pops / adds).
        cols = jnp.concatenate(
            [y[p, :, m0 + off:m0 + off + tm] for p, off in taps], axis=0)
        acc = jnp.dot(w, cols, preferred_element_type=jnp.float32)  # (TCout, TM)
        o_ref[0, :, m0:m0 + tm] = acc

        if with_stats:
            # BN1 statistics epilogue while the tile is still live on-chip.
            om = omask_ref[:, m0:m0 + tm]              # (1, TM) valid-output mask
            am = acc * om
            s_p = jnp.sum(am, axis=1, keepdims=True)
            q_p = jnp.sum(am * acc, axis=1, keepdims=True)
            s_tot = s_p if s_tot is None else s_tot + s_p
            q_tot = q_p if q_tot is None else q_tot + q_p

        if with_shortcut:
            # Shortcut conv consumes the raw (already zero-padded) input: same
            # taps, same input DMA, second weight slab / output.
            cols_x = jnp.concatenate(
                [x[p, :, m0 + off:m0 + off + tm] for p, off in taps], axis=0)
            osc_ref[0, :, m0:m0 + tm] = jnp.dot(
                ws, cols_x, preferred_element_type=jnp.float32)

    if with_stats:
        sum_ref[0] = s_tot
        ssq_ref[0] = q_tot


# ---------------------------------------------------------------------------
# pallas_call wrappers
# ---------------------------------------------------------------------------
def bn_stats(x3):
    """x3: (N, C, M) f32 -> (sum, sumsq), each (C, 1)."""
    N, C, M = x3.shape
    s, q = pl.pallas_call(
        bn_stats_kernel,
        grid=(N,),
        in_specs=[pl.BlockSpec((1, C, M), lambda n: (n, 0, 0))],
        out_specs=[pl.BlockSpec((C, 1), lambda n: (0, 0)),
                   pl.BlockSpec((C, 1), lambda n: (0, 0))],
        out_shape=[jax.ShapeDtypeStruct((C, 1), jnp.float32),
                   jax.ShapeDtypeStruct((C, 1), jnp.float32)],
        compiler_params=pltpu.CompilerParams(
            dimension_semantics=("arbitrary",),        # cross-N accumulation
            vmem_limit_bytes=_vmem_limit_bytes()),
    )(x3)
    return s, q


def _conv_dual(xph, scale, shift, mask, wflat, wsflat, omask, *, taps, m_out):
    """Shared pallas_call for the fused conv kernel.

    Returns (out, shortcut_out_or_None, (sum, ssq)_or_None); main/shortcut
    outputs are (N, Cout, m_out) lane-dense tensors on the padded output grid.
    """
    N, P, Cin, L = xph.shape
    Cout = wflat.shape[0]
    with_shortcut = wsflat is not None
    with_stats = omask is not None

    TM = _pick_lane_tile(m_out)
    n_tiles = m_out // TM
    TCo = _pick_cout_tile(Cout)
    n_co = Cout // TCo

    inputs = [xph, scale, shift, mask]
    in_specs = [
        pl.BlockSpec((1, P, Cin, L), lambda n, c: (n, 0, 0, 0)),
        pl.BlockSpec((Cin, 1), lambda n, c: (0, 0)),
        pl.BlockSpec((Cin, 1), lambda n, c: (0, 0)),
        pl.BlockSpec((1, L), lambda n, c: (0, 0)),
    ]
    if with_stats:
        inputs.append(omask)
        in_specs.append(pl.BlockSpec((1, m_out), lambda n, c: (0, 0)))
    inputs.append(wflat)
    in_specs.append(pl.BlockSpec((TCo, 9 * Cin), lambda n, c: (c, 0)))
    if with_shortcut:
        inputs.append(wsflat)
        in_specs.append(pl.BlockSpec((TCo, 9 * Cin), lambda n, c: (c, 0)))

    out_shape = [jax.ShapeDtypeStruct((N, Cout, m_out), jnp.float32)]
    out_specs = [pl.BlockSpec((1, TCo, m_out), lambda n, c: (n, c, 0))]
    if with_shortcut:
        out_shape.append(jax.ShapeDtypeStruct((N, Cout, m_out), jnp.float32))
        out_specs.append(pl.BlockSpec((1, TCo, m_out), lambda n, c: (n, c, 0)))
    if with_stats:
        out_shape += [jax.ShapeDtypeStruct((N, Cout, 1), jnp.float32)] * 2
        out_specs += [pl.BlockSpec((1, TCo, 1), lambda n, c: (n, c, 0))] * 2

    kernel = partial(fused_conv_kernel, taps=taps, tm=TM, n_tiles=n_tiles,
                     with_shortcut=with_shortcut, with_stats=with_stats)
    outs = pl.pallas_call(
        kernel,
        grid=(N, n_co),
        in_specs=in_specs,
        out_specs=out_specs,
        out_shape=out_shape,
        compiler_params=pltpu.CompilerParams(
            dimension_semantics=("parallel", "parallel"),
            vmem_limit_bytes=_vmem_limit_bytes()),
    )(*inputs)

    idx = 0
    o = outs[idx]; idx += 1
    osc = None
    if with_shortcut:
        osc = outs[idx]; idx += 1
    stats = None
    if with_stats:
        stats = (outs[idx], outs[idx + 1])
    return o, osc, stats


def _pad_channels(x4, scale, shift, w, ws):
    """Zero-pad Cin to a multiple of 8 (f32 sublane packing / aligned K concat)."""
    cin = x4.shape[1]
    cin_p = _round_up(cin, 8)
    if cin_p == cin:
        return x4, scale, shift, w, ws
    pad = cin_p - cin
    x4 = jnp.pad(x4, ((0, 0), (0, pad), (0, 0), (0, 0)))
    scale = jnp.pad(scale, ((0, pad), (0, 0)))
    shift = jnp.pad(shift, ((0, pad), (0, 0)))
    w = jnp.pad(w, ((0, 0), (0, pad), (0, 0), (0, 0)))
    if ws is not None:
        ws = jnp.pad(ws, ((0, 0), (0, pad), (0, 0), (0, 0)))
    return x4, scale, shift, w, ws


def conv3x3_s1(x4, w, scale, shift, *, ws=None, with_stats=False):
    """3x3 / stride-1 / pad-1 conv of relu(x*scale+shift) (NCHW in / NCHW out).

    Optionally also returns the same-stride conv of the RAW input (shortcut
    path, weights `ws`) from the same input read, and the per-image BN
    statistics (masked sum / sum-of-squares) of the main output.
    """
    x4, scale, shift, w, ws = _pad_channels(x4, scale, shift, w, ws)
    N, Cin, H, W = x4.shape
    Cout = w.shape[0]
    Hp, Wp = H + 2, W + 2
    Mp = Hp * Wp
    Mpad = _round_up(Mp, 128)
    L = Mpad + 2 * Wp + 2                     # room for the largest tap shift

    # Flat padded image, left-shifted by Wp+1 so tap (dh, dw) becomes the
    # constant lane shift dh*Wp + dw of the flat array.
    xp = jnp.pad(x4, ((0, 0), (0, 0), (1, 1), (1, 1))).reshape(N, Cin, Mp)
    xph = jnp.pad(xp, ((0, 0), (0, 0), (Wp + 1, L - Mp - Wp - 1)))[:, None]

    interior = jnp.pad(jnp.ones((H, W), jnp.float32), ((1, 1), (1, 1))).reshape(Mp)
    mask = jnp.pad(interior, (Wp + 1, L - Mp - Wp - 1)).reshape(1, L)
    omask = (jnp.pad(interior, (0, Mpad - Mp)).reshape(1, Mpad)
             if with_stats else None)

    taps = tuple((0, dh * Wp + dw) for dh in range(3) for dw in range(3))
    wflat = jnp.transpose(w, (0, 2, 3, 1)).reshape(Cout, 9 * Cin)
    wsflat = (jnp.transpose(ws, (0, 2, 3, 1)).reshape(Cout, 9 * Cin)
              if ws is not None else None)

    o, osc, stats = _conv_dual(xph, scale, shift, mask, wflat, wsflat, omask,
                               taps=taps, m_out=Mpad)

    def crop(t):  # padded Hp x Wp output grid -> valid H x W (NCHW)
        return t[:, :, :Mp].reshape(N, Cout, Hp, Wp)[:, :, 1:1 + H, 1:1 + W]

    return crop(o), (crop(osc) if osc is not None else None), stats


def conv3x3_s2(x4, w, scale, shift, *, ws=None, with_stats=False):
    """Fully fused 3x3 / stride-2 conv (module's (0,1,0,1) padding) of
    relu(x*scale+shift): BN affine + ReLU + strided conv (+ raw-path shortcut
    conv, + BN1 stats) in one kernel over a parity-phase-decomposed view of x,
    so every tap is a constant lane shift of one of 4 phases."""
    x4, scale, shift, w, ws = _pad_channels(x4, scale, shift, w, ws)
    N, Cin, H, W = x4.shape
    if H % 2 or W % 2:
        # TODO(synk): odd spatial extents need per-phase shapes; not required
        #             for standard ResNet stride-2 blocks.
        raise NotImplementedError("stride-2 path requires even H and W")
    Cout = w.shape[0]
    Ho, Wo = H // 2, W // 2
    Hq, Wq = Ho + 1, Wo + 1                    # output grid padded by one row/col
    Mq = Hq * Wq
    Mpad = _round_up(Mq, 128)
    Lq = Mpad + Wq + 1                         # room for the largest tap shift

    # phase[p = r*2+s][i, j] = xpad[2i+r, 2j+s]; tap (dh, dw) -> phase
    # (dh%2, dw%2) at lane shift (dh//2)*Wq + dw//2.
    xp2 = jnp.pad(x4, ((0, 0), (0, 0), (0, 2), (0, 2)))      # (N, C, 2Hq, 2Wq)
    ph = xp2.reshape(N, Cin, Hq, 2, Wq, 2)
    ph = jnp.transpose(ph, (0, 3, 5, 1, 2, 4)).reshape(N, 4, Cin, Mq)
    ph = jnp.pad(ph, ((0, 0), (0, 0), (0, 0), (0, Lq - Mq)))

    valid = jnp.pad(jnp.ones((Ho, Wo), jnp.float32), ((0, 1), (0, 1))).reshape(Mq)
    mask = jnp.pad(valid, (0, Lq - Mq)).reshape(1, Lq)
    omask = (jnp.pad(valid, (0, Mpad - Mq)).reshape(1, Mpad)
             if with_stats else None)

    taps = tuple(((dh % 2) * 2 + (dw % 2), (dh // 2) * Wq + (dw // 2))
                 for dh in range(3) for dw in range(3))
    wflat = jnp.transpose(w, (0, 2, 3, 1)).reshape(Cout, 9 * Cin)
    wsflat = (jnp.transpose(ws, (0, 2, 3, 1)).reshape(Cout, 9 * Cin)
              if ws is not None else None)

    o, osc, stats = _conv_dual(ph, scale, shift, mask, wflat, wsflat, omask,
                               taps=taps, m_out=Mpad)

    def crop(t):  # padded Hq x Wq output grid -> valid Ho x Wo (NCHW)
        return t[:, :, :Mq].reshape(N, Cout, Hq, Wq)[:, :, :Ho, :Wo]

    return crop(o), (crop(osc) if osc is not None else None), stats


# ---------------------------------------------------------------------------
# Glue math
# ---------------------------------------------------------------------------
def _affine_from_stats(s, q, count, gamma, beta):
    count = float(count)
    mean = s / count
    var = jnp.maximum(q / count - mean * mean, 0.0)    # biased var (PyTorch BN)
    scale = gamma.reshape(-1, 1) * jax.lax.rsqrt(var + EPS)
    shift = beta.reshape(-1, 1) - mean * scale
    return scale, shift                                # each (C, 1)


# ---------------------------------------------------------------------------
# _PreActBlock forward (Pallas-backed), NCHW in / NCHW out
# ---------------------------------------------------------------------------
def preact_block(x_nchw, params, *, stride):
    N, Cin, H, W = x_nchw.shape
    Cout = params["w1"].shape[0]
    has_shortcut = (stride != 1) or (Cin != Cout)
    x3 = x_nchw.reshape(N, Cin, H * W)

    # BatchNorm-0 batch statistics (single fused sum / sum-of-squares pass).
    s0, q0 = bn_stats(x3)
    scale0, shift0 = _affine_from_stats(s0, q0, N * H * W,
                                        params["g0"], params["b0"])

    ws = params["ws"] if has_shortcut else None
    if stride == 1:
        Ho, Wo = H, W
        h, sc, stats = conv3x3_s1(x_nchw, params["w1"], scale0, shift0,
                                  ws=ws, with_stats=True)
        if sc is None:
            sc = x_nchw                                # identity shortcut
    elif stride == 2:
        Ho, Wo = H // 2, W // 2
        h, sc, stats = conv3x3_s2(x_nchw, params["w1"], scale0, shift0,
                                  ws=ws, with_stats=True)
    else:
        raise ValueError("Unsupported `stride`.")

    # BatchNorm-1 affine from the conv-1 epilogue stats (no h re-read from HBM).
    s1 = jnp.sum(stats[0], axis=0)                     # (Cout, 1)
    q1 = jnp.sum(stats[1], axis=0)
    scale1, shift1 = _affine_from_stats(s1, q1, N * Ho * Wo,
                                        params["g1"], params["b1"])

    # conv_2d_2 of relu(bn1(h)); residual added post-crop in one XLA elementwise.
    out, _, _ = conv3x3_s1(h, params["w2"], scale1, shift1,
                           ws=None, with_stats=False)
    return out + sc                                    # (N, Cout, Ho, Wo)


# ---------------------------------------------------------------------------
# Pure-JAX reference (mirrors the PyTorch module, NCHW, f32 HIGHEST)
# ---------------------------------------------------------------------------
def reference_forward(x, params, stride):
    def bn(v, g, b):
        mean = v.mean(axis=(0, 2, 3), keepdims=True)
        var = jnp.square(v - mean).mean(axis=(0, 2, 3), keepdims=True)
        return (v - mean) * jax.lax.rsqrt(var + EPS) * g.reshape(1, -1, 1, 1) \
            + b.reshape(1, -1, 1, 1)

    def pad(v):
        if stride == 1:
            return jnp.pad(v, ((0, 0), (0, 0), (1, 1), (1, 1)))
        return jnp.pad(v, ((0, 0), (0, 0), (0, 1), (0, 1)))

    def conv(v, w, s, padding):
        return jax.lax.conv_general_dilated(
            v, w, (s, s), padding,
            dimension_numbers=("NCHW", "OIHW", "NCHW"),
            precision=jax.lax.Precision.HIGHEST)

    Cin, Cout = x.shape[1], params["w1"].shape[0]
    has_shortcut = (stride != 1) or (Cin != Cout)
    out = jax.nn.relu(bn(x, params["g0"], params["b0"]))
    shortcut = conv(pad(x), params["ws"], stride, "VALID") if has_shortcut else x
    out = conv(pad(out), params["w1"], stride, "VALID")
    out = conv(jax.nn.relu(bn(out, params["g1"], params["b1"])),
               params["w2"], 1, ((1, 1), (1, 1)))
    return out + shortcut


# ---------------------------------------------------------------------------
if __name__ == "__main__":
    key = jax.random.PRNGKey(0)

    def make_params(k, cin, cout):
        ks = jax.random.split(k, 7)
        return dict(
            g0=1.0 + 0.1 * jax.random.normal(ks[0], (cin,), jnp.float32),
            b0=0.1 * jax.random.normal(ks[1], (cin,), jnp.float32),
            w1=0.1 * jax.random.normal(ks[2], (cout, cin, 3, 3), jnp.float32),
            g1=1.0 + 0.1 * jax.random.normal(ks[3], (cout,), jnp.float32),
            b1=0.1 * jax.random.normal(ks[4], (cout,), jnp.float32),
            w2=0.1 * jax.random.normal(ks[5], (cout, cout, 3, 3), jnp.float32),
            ws=0.1 * jax.random.normal(ks[6], (cout, cin, 3, 3), jnp.float32),
        )

    configs = [
        # (N, Cin, Cout, H, W, stride)
        (2, 4, 8, 16, 16, 2),   # stride-2 downsampling block (fused dual-conv path)
        (2, 4, 8, 16, 16, 1),   # stride-1 channel-expanding block (shortcut conv)
        (2, 8, 8, 16, 16, 1),   # stride-1 identity-shortcut block
    ]
    for cfg in configs:
        N, Cin, Cout, H, W, stride = cfg
        key, kp, kx = jax.random.split(key, 3)
        params = make_params(kp, Cin, Cout)
        x = jax.random.normal(kx, (N, Cin, H, W), jnp.float32)

        out = jax.jit(partial(preact_block, stride=stride))(x, params)
        jax.block_until_ready(out)

        ref = reference_forward(x, params, stride)
        assert out.shape == ref.shape == (N, Cout, H // stride, W // stride), cfg
        err = float(jnp.max(jnp.abs(out - ref)))
        # Kernels use default MXU precision (bf16 passes) vs. the f32-HIGHEST
        # reference, hence the relaxed tolerance.
        assert jnp.allclose(out, ref, atol=2e-2, rtol=2e-2), (cfg, err)

    print("KERNEL_OK")
</pallas_src>

<mosaic_0001>
module attributes {stable_mosaic.version = 11 : i64} {
  func.func @bn_stats_kernel(%arg0: i32, %arg1: memref<1x4x256xf32, #tpu.memory_space<vmem>>, %arg2: memref<4x1xf32, #tpu.memory_space<vmem>>, %arg3: memref<4x1xf32, #tpu.memory_space<vmem>>) attributes {dimension_semantics = [#tpu.dimension_semantics<arbitrary>], iteration_bounds = array<i64: 2>, scalar_prefetch = 0 : i64, scratch_operands = 0 : i64, tpu.core_type = #tpu.core_type<tc>, window_params = [{transform_indices = @transform_0, window_bounds = array<i64: 1, 4, 256>}, {pipeline_mode = #tpu.pipeline_mode<synchronous>, transform_indices = @transform_1, window_bounds = array<i64: 4, 1>}, {pipeline_mode = #tpu.pipeline_mode<synchronous>, transform_indices = @transform_2, window_bounds = array<i64: 4, 1>}]} {
    %c0_i32 = arith.constant 0 : i32
    %0 = arith.cmpi eq, %arg0, %c0_i32 : i32
    %1 = arith.extui %0 : i1 to i32
    %c0_i32_0 = arith.constant 0 : i32
    %2 = arith.cmpi ne, %1, %c0_i32_0 : i32
    scf.if %2 {
      %cst_12 = arith.constant 0.000000e+00 : f32
      %16 = vector.broadcast %cst_12 : f32 to vector<4x1xf32>
      %c0_13 = arith.constant 0 : index
      %c0_14 = arith.constant 0 : index
      %17 = vector.load %arg2[%c0_13, %c0_14] : memref<4x1xf32, #tpu.memory_space<vmem>>, vector<4x1xf32>
      tpu.vector_store %arg2[%c0_13, %c0_14], %16 {strides = array<i32>} : memref<4x1xf32, #tpu.memory_space<vmem>>, vector<4x1xf32>,
      %cst_15 = arith.constant 0.000000e+00 : f32
      %18 = vector.broadcast %cst_15 : f32 to vector<4x1xf32>
      %c0_16 = arith.constant 0 : index
      %c0_17 = arith.constant 0 : index
      %19 = vector.load %arg3[%c0_16, %c0_17] : memref<4x1xf32, #tpu.memory_space<vmem>>, vector<4x1xf32>
      tpu.vector_store %arg3[%c0_16, %c0_17], %18 {strides = array<i32>} : memref<4x1xf32, #tpu.memory_space<vmem>>, vector<4x1xf32>,
    } else {
    }
    %c0 = arith.constant 0 : index
    %c0_1 = arith.constant 0 : index
    %c0_2 = arith.constant 0 : index
    %3 = vector.load %arg1[%c0, %c0_1, %c0_2] : memref<1x4x256xf32, #tpu.memory_space<vmem>>, vector<1x4x256xf32>
    %4 = vector.shape_cast %3 : vector<1x4x256xf32> to vector<4x256xf32>
    %c0_3 = arith.constant 0 : index
    %c0_4 = arith.constant 0 : index
    %5 = vector.load %arg2[%c0_3, %c0_4] : memref<4x1xf32, #tpu.memory_space<vmem>>, vector<4x1xf32>
    %cst = arith.constant dense<0.000000e+00> : vector<4xf32>
    %6 = vector.multi_reduction <add>, %4, %cst [1] : vector<4x256xf32> to vector<4xf32>
    %7 = vector.shape_cast %6 : vector<4xf32> to vector<4x1xf32>
    %8 = arith.addf %5, %7 : vector<4x1xf32>
    %c0_5 = arith.constant 0 : index
    %c0_6 = arith.constant 0 : index
    %9 = vector.load %arg2[%c0_5, %c0_6] : memref<4x1xf32, #tpu.memory_space<vmem>>, vector<4x1xf32>
    tpu.vector_store %arg2[%c0_5, %c0_6], %8 {strides = array<i32>} : memref<4x1xf32, #tpu.memory_space<vmem>>, vector<4x1xf32>,
    %c0_7 = arith.constant 0 : index
    %c0_8 = arith.constant 0 : index
    %10 = vector.load %arg3[%c0_7, %c0_8] : memref<4x1xf32, #tpu.memory_space<vmem>>, vector<4x1xf32>
    %11 = arith.mulf %4, %4 : vector<4x256xf32>
    %cst_9 = arith.constant dense<0.000000e+00> : vector<4xf32>
    %12 = vector.multi_reduction <add>, %11, %cst_9 [1] : vector<4x256xf32> to vector<4xf32>
    %13 = vector.shape_cast %12 : vector<4xf32> to vector<4x1xf32>
    %14 = arith.addf %10, %13 : vector<4x1xf32>
    %c0_10 = arith.constant 0 : index
    %c0_11 = arith.constant 0 : index
    %15 = vector.load %arg3[%c0_10, %c0_11] : memref<4x1xf32, #tpu.memory_space<vmem>>, vector<4x1xf32>
    tpu.vector_store %arg3[%c0_10, %c0_11], %14 {strides = array<i32>} : memref<4x1xf32, #tpu.memory_space<vmem>>, vector<4x1xf32>,
    return
  }
  func.func @transform_0(%arg0: i32) -> (i32, i32, i32) {
    %c0_i32 = arith.constant 0 : i32
    %c0_i32_0 = arith.constant 0 : i32
    %c0_i32_1 = arith.constant 0 : i32
    return %arg0, %c0_i32, %c0_i32_0 : i32, i32, i32
  }
  func.func @transform_1(%arg0: i32) -> (i32, i32) {
    %c0_i32 = arith.constant 0 : i32
    %c0_i32_0 = arith.constant 0 : i32
    %c0_i32_1 = arith.constant 0 : i32
    return %c0_i32, %c0_i32_0 : i32, i32
  }
  func.func @transform_2(%arg0: i32) -> (i32, i32) {
    %c0_i32 = arith.constant 0 : i32
    %c0_i32_0 = arith.constant 0 : i32
    %c0_i32_1 = arith.constant 0 : i32
    return %c0_i32, %c0_i32_0 : i32, i32
  }
}

module attributes {stable_mosaic.version = 11 : i64} {
  func.func @fused_conv_kernel(%arg0: i32, %arg1: i32, %arg2: memref<1x4x8x138xf32, #tpu.memory_space<vmem>>, %arg3: memref<8x1xf32, #tpu.memory_space<vmem>>, %arg4: memref<8x1xf32, #tpu.memory_space<vmem>>, %arg5: memref<1x138xf32, #tpu.memory_space<vmem>>, %arg6: memref<1x128xf32, #tpu.memory_space<vmem>>, %arg7: memref<8x72xf32, #tpu.memory_space<vmem>>, %arg8: memref<8x72xf32, #tpu.memory_space<vmem>>, %arg9: memref<1x8x128xf32, #tpu.memory_space<vmem>>, %arg10: memref<1x8x128xf32, #tpu.memory_space<vmem>>, %arg11: memref<1x8x1xf32, #tpu.memory_space<vmem>>, %arg12: memref<1x8x1xf32, #tpu.memory_space<vmem>>) attributes {dimension_semantics = [#tpu.dimension_semantics<parallel>, #tpu.dimension_semantics<parallel>], iteration_bounds = array<i64: 2, 1>, scalar_prefetch = 0 : i64, scratch_operands = 0 : i64, tpu.core_type = #tpu.core_type<tc>, window_params = [{transform_indices = @transform_0, window_bounds = array<i64: 1, 4, 8, 138>}, {pipeline_mode = #tpu.pipeline_mode<synchronous>, transform_indices = @transform_1, window_bounds = array<i64: 8, 1>}, {pipeline_mode = #tpu.pipeline_mode<synchronous>, transform_indices = @transform_2, window_bounds = array<i64: 8, 1>}, {pipeline_mode = #tpu.pipeline_mode<synchronous>, transform_indices = @transform_3, window_bounds = array<i64: 1, 138>}, {pipeline_mode = #tpu.pipeline_mode<synchronous>, transform_indices = @transform_4, window_bounds = array<i64: 1, 128>}, {transform_indices = @transform_5, window_bounds = array<i64: 8, 72>}, {transform_indices = @transform_6, window_bounds = array<i64: 8, 72>}, {transform_indices = @transform_7, window_bounds = array<i64: 1, 8, 128>}, {transform_indices = @transform_8, window_bounds = array<i64: 1, 8, 128>}, {transform_indices = @transform_9, window_bounds = array<i64: 1, 8, 1>}, {transform_indices = @transform_10, window_bounds = array<i64: 1, 8, 1>}]} {
    %c0 = arith.constant 0 : index
    %c0_0 = arith.constant 0 : index
    %c0_1 = arith.constant 0 : index
    %c0_2 = arith.constant 0 : index
    %0 = vector.load %arg2[%c0, %c0_0, %c0_1, %c0_2] : memref<1x4x8x138xf32, #tpu.memory_space<vmem>>, vector<1x4x8x138xf32>
    %1 = vector.shape_cast %0 : vector<1x4x8x138xf32> to vector<4x8x138xf32>
    %c0_3 = arith.constant 0 : index
    %c0_4 = arith.constant 0 : index
    %2 = vector.load %arg3[%c0_3, %c0_4] : memref<8x1xf32, #tpu.memory_space<vmem>>, vector<8x1xf32>
    %3 = vector.shape_cast %2 : vector<8x1xf32> to vector<1x8x1xf32>
    %4 = vector.broadcast %3 : vector<1x8x1xf32> to vector<4x8x138xf32>
    %5 = arith.mulf %1, %4 : vector<4x8x138xf32>
    %c0_5 = arith.constant 0 : index
    %c0_6 = arith.constant 0 : index
    %6 = vector.load %arg4[%c0_5, %c0_6] : memref<8x1xf32, #tpu.memory_space<vmem>>, vector<8x1xf32>
    %7 = vector.shape_cast %6 : vector<8x1xf32> to vector<1x8x1xf32>
    %8 = vector.broadcast %7 : vector<1x8x1xf32> to vector<4x8x138xf32>
    %9 = arith.addf %5, %8 : vector<4x8x138xf32>
    %cst = arith.constant 0.000000e+00 : f32
    %10 = vector.broadcast %cst : f32 to vector<4x8x138xf32>
    %11 = arith.maximumf %9, %10 : vector<4x8x138xf32>
    %c0_7 = arith.constant 0 : index
    %c0_8 = arith.constant 0 : index
    %12 = vector.load %arg5[%c0_7, %c0_8] : memref<1x138xf32, #tpu.memory_space<vmem>>, vector<1x138xf32>
    %13 = vector.shape_cast %12 : vector<1x138xf32> to vector<1x1x138xf32>
    %14 = vector.broadcast %13 : vector<1x1x138xf32> to vector<4x8x138xf32>
    %15 = arith.mulf %11, %14 : vector<4x8x138xf32>
    %c0_9 = arith.constant 0 : index
    %c0_10 = arith.constant 0 : index
    %16 = vector.load %arg7[%c0_9, %c0_10] : memref<8x72xf32, #tpu.memory_space<vmem>>, vector<8x72xf32>
    %c0_11 = arith.constant 0 : index
    %c0_12 = arith.constant 0 : index
    %17 = vector.load %arg8[%c0_11, %c0_12] : memref<8x72xf32, #tpu.memory_space<vmem>>, vector<8x72xf32>
    %18 = vector.extract_strided_slice %15 {offsets = [0, 0, 0], sizes = [1, 8, 128], strides = [1, 1, 1]} : vector<4x8x138xf32> to vector<1x8x128xf32>
    %19 = vector.shape_cast %18 : vector<1x8x128xf32> to vector<8x128xf32>
    %20 = vector.extract_strided_slice %15 {offsets = [1, 0, 0], sizes = [1, 8, 128], strides = [1, 1, 1]} : vector<4x8x138xf32> to vector<1x8x128xf32>
    %21 = vector.shape_cast %20 : vector<1x8x128xf32> to vector<8x128xf32>
    %22 = vector.extract_strided_slice %15 {offsets = [0, 0, 1], sizes = [1, 8, 128], strides = [1, 1, 1]} : vector<4x8x138xf32> to vector<1x8x128xf32>
    %23 = vector.shape_cast %22 : vector<1x8x128xf32> to vector<8x128xf32>
    %24 = vector.extract_strided_slice %15 {offsets = [2, 0, 0], sizes = [1, 8, 128], strides = [1, 1, 1]} : vector<4x8x138xf32> to vector<1x8x128xf32>
    %25 = vector.shape_cast %24 : vector<1x8x128xf32> to vector<8x128xf32>
    %26 = vector.extract_strided_slice %15 {offsets = [3, 0, 0], sizes = [1, 8, 128], strides = [1, 1, 1]} : vector<4x8x138xf32> to vector<1x8x128xf32>
    %27 = vector.shape_cast %26 : vector<1x8x128xf32> to vector<8x128xf32>
    %28 = vector.extract_strided_slice %15 {offsets = [2, 0, 1], sizes = [1, 8, 128], strides = [1, 1, 1]} : vector<4x8x138xf32> to vector<1x8x128xf32>
    %29 = vector.shape_cast %28 : vector<1x8x128xf32> to vector<8x128xf32>
    %30 = vector.extract_strided_slice %15 {offsets = [0, 0, 9], sizes = [1, 8, 128], strides = [1, 1, 1]} : vector<4x8x138xf32> to vector<1x8x128xf32>
    %31 = vector.shape_cast %30 : vector<1x8x128xf32> to vector<8x128xf32>
    %32 = vector.extract_strided_slice %15 {offsets = [1, 0, 9], sizes = [1, 8, 128], strides = [1, 1, 1]} : vector<4x8x138xf32> to vector<1x8x128xf32>
    %33 = vector.shape_cast %32 : vector<1x8x128xf32> to vector<8x128xf32>
    %34 = vector.extract_strided_slice %15 {offsets = [0, 0, 10], sizes = [1, 8, 128], strides = [1, 1, 1]} : vector<4x8x138xf32> to vector<1x8x128xf32>
    %35 = vector.shape_cast %34 : vector<1x8x128xf32> to vector<8x128xf32>
    %36 = tpu.concatenate %19, %21, %23, %25, %27, %29, %31, %33, %35 in 0 : vector<8x128xf32>, vector<8x128xf32>, vector<8x128xf32>, vector<8x128xf32>, vector<8x128xf32>, vector<8x128xf32>, vector<8x128xf32>, vector<8x128xf32>, vector<8x128xf32> -> vector<72x128xf32>
    %cst_13 = arith.constant dense<0.000000e+00> : vector<8x128xf32>
    %37 = tpu.matmul %16, %36, %cst_13 {dimension_numbers = #tpu.dot_dimension_numbers<[1], [0], [0], [1], [0, 0, 1, 1], [], []>} : vector<8x72xf32>, vector<72x128xf32>, vector<8x128xf32> -> vector<8x128xf32>
    %c0_14 = arith.constant 0 : index
    %c0_15 = arith.constant 0 : index
    %c0_16 = arith.constant 0 : index
    %38 = vector.load %arg9[%c0_14, %c0_15, %c0_16] : memref<1x8x128xf32, #tpu.memory_space<vmem>>, vector<1x8x128xf32>
    %39 = vector.shape_cast %38 : vector<1x8x128xf32> to vector<8x128xf32>
    %40 = vector.shape_cast %37 : vector<8x128xf32> to vector<1x8x128xf32>
    tpu.vector_store %arg9[%c0_14, %c0_15, %c0_16], %40 {strides = array<i32>} : memref<1x8x128xf32, #tpu.memory_space<vmem>>, vector<1x8x128xf32>,
    %c0_17 = arith.constant 0 : index
    %c0_18 = arith.constant 0 : index
    %41 = vector.load %arg6[%c0_17, %c0_18] : memref<1x128xf32, #tpu.memory_space<vmem>>, vector<1x128xf32>
    %42 = vector.broadcast %41 : vector<1x128xf32> to vector<8x128xf32>
    %43 = arith.mulf %37, %42 : vector<8x128xf32>
    %cst_19 = arith.constant dense<0.000000e+00> : vector<8xf32>
    %44 = vector.multi_reduction <add>, %43, %cst_19 [1] : vector<8x128xf32> to vector<8xf32>
    %45 = vector.shape_cast %44 : vector<8xf32> to vector<8x1xf32>
    %46 = arith.mulf %43, %37 : vector<8x128xf32>
    %cst_20 = arith.constant dense<0.000000e+00> : vector<8xf32>
    %47 = vector.multi_reduction <add>, %46, %cst_20 [1] : vector<8x128xf32> to vector<8xf32>
    %48 = vector.shape_cast %47 : vector<8xf32> to vector<8x1xf32>
    %49 = vector.extract_strided_slice %1 {offsets = [0, 0, 0], sizes = [1, 8, 128], strides = [1, 1, 1]} : vector<4x8x138xf32> to vector<1x8x128xf32>
    %50 = vector.shape_cast %49 : vector<1x8x128xf32> to vector<8x128xf32>
    %51 = vector.extract_strided_slice %1 {offsets = [1, 0, 0], sizes = [1, 8, 128], strides = [1, 1, 1]} : vector<4x8x138xf32> to vector<1x8x128xf32>
    %52 = vector.shape_cast %51 : vector<1x8x128xf32> to vector<8x128xf32>
    %53 = vector.extract_strided_slice %1 {offsets = [0, 0, 1], sizes = [1, 8, 128], strides = [1, 1, 1]} : vector<4x8x138xf32> to vector<1x8x128xf32>
    %54 = vector.shape_cast %53 : vector<1x8x128xf32> to vector<8x128xf32>
    %55 = vector.extract_strided_slice %1 {offsets = [2, 0, 0], sizes = [1, 8, 128], strides = [1, 1, 1]} : vector<4x8x138xf32> to vector<1x8x128xf32>
    %56 = vector.shape_cast %55 : vector<1x8x128xf32> to vector<8x128xf32>
    %57 = vector.extract_strided_slice %1 {offsets = [3, 0, 0], sizes = [1, 8, 128], strides = [1, 1, 1]} : vector<4x8x138xf32> to vector<1x8x128xf32>
    %58 = vector.shape_cast %57 : vector<1x8x128xf32> to vector<8x128xf32>
    %59 = vector.extract_strided_slice %1 {offsets = [2, 0, 1], sizes = [1, 8, 128], strides = [1, 1, 1]} : vector<4x8x138xf32> to vector<1x8x128xf32>
    %60 = vector.shape_cast %59 : vector<1x8x128xf32> to vector<8x128xf32>
    %61 = vector.extract_strided_slice %1 {offsets = [0, 0, 9], sizes = [1, 8, 128], strides = [1, 1, 1]} : vector<4x8x138xf32> to vector<1x8x128xf32>
    %62 = vector.shape_cast %61 : vector<1x8x128xf32> to vector<8x128xf32>
    %63 = vector.extract_strided_slice %1 {offsets = [1, 0, 9], sizes = [1, 8, 128], strides = [1, 1, 1]} : vector<4x8x138xf32> to vector<1x8x128xf32>
    %64 = vector.shape_cast %63 : vector<1x8x128xf32> to vector<8x128xf32>
    %65 = vector.extract_strided_slice %1 {offsets = [0, 0, 10], sizes = [1, 8, 128], strides = [1, 1, 1]} : vector<4x8x138xf32> to vector<1x8x128xf32>
    %66 = vector.shape_cast %65 : vector<1x8x128xf32> to vector<8x128xf32>
    %67 = tpu.concatenate %50, %52, %54, %56, %58, %60, %62, %64, %66 in 0 : vector<8x128xf32>, vector<8x128xf32>, vector<8x128xf32>, vector<8x128xf32>, vector<8x128xf32>, vector<8x128xf32>, vector<8x128xf32>, vector<8x128xf32>, vector<8x128xf32> -> vector<72x128xf32>
    %cst_21 = arith.constant dense<0.000000e+00> : vector<8x128xf32>
    %68 = tpu.matmul %17, %67, %cst_21 {dimension_numbers = #tpu.dot_dimension_numbers<[1], [0], [0], [1], [0, 0, 1, 1], [], []>} : vector<8x72xf32>, vector<72x128xf32>, vector<8x128xf32> -> vector<8x128xf32>
    %c0_22 = arith.constant 0 : index
    %c0_23 = arith.constant 0 : index
    %c0_24 = arith.constant 0 : index
    %69 = vector.load %arg10[%c0_22, %c0_23, %c0_24] : memref<1x8x128xf32, #tpu.memory_space<vmem>>, vector<1x8x128xf32>
    %70 = vector.shape_cast %69 : vector<1x8x128xf32> to vector<8x128xf32>
    %71 = vector.shape_cast %68 : vector<8x128xf32> to vector<1x8x128xf32>
    tpu.vector_store %arg10[%c0_22, %c0_23, %c0_24], %71 {strides = array<i32>} : memref<1x8x128xf32, #tpu.memory_space<vmem>>, vector<1x8x128xf32>,
    %c0_25 = arith.constant 0 : index
    %c0_26 = arith.constant 0 : index
    %c0_27 = arith.constant 0 : index
    %72 = vector.load %arg11[%c0_25, %c0_26, %c0_27] : memref<1x8x1xf32, #tpu.memory_space<vmem>>, vector<1x8x1xf32>
    %73 = vector.shape_cast %72 : vector<1x8x1xf32> to vector<8x1xf32>
    %74 = vector.shape_cast %45 : vector<8x1xf32> to vector<1x8x1xf32>
    tpu.vector_store %arg11[%c0_25, %c0_26, %c0_27], %74 {strides = array<i32>} : memref<1x8x1xf32, #tpu.memory_space<vmem>>, vector<1x8x1xf32>,
    %c0_28 = arith.constant 0 : index
    %c0_29 = arith.constant 0 : index
    %c0_30 = arith.constant 0 : index
    %75 = vector.load %arg12[%c0_28, %c0_29, %c0_30] : memref<1x8x1xf32, #tpu.memory_space<vmem>>, vector<1x8x1xf32>
    %76 = vector.shape_cast %75 : vector<1x8x1xf32> to vector<8x1xf32>
    %77 = vector.shape_cast %48 : vector<8x1xf32> to vector<1x8x1xf32>
    tpu.vector_store %arg12[%c0_28, %c0_29, %c0_30], %77 {strides = array<i32>} : memref<1x8x1xf32, #tpu.memory_space<vmem>>, vector<1x8x1xf32>,
    return
  }
  func.func @transform_0(%arg0: i32, %arg1: i32) -> (i32, i32, i32, i32) {
    %c0_i32 = arith.constant 0 : i32
    %c0_i32_0 = arith.constant 0 : i32
    %c0_i32_1 = arith.constant 0 : i32
    %c0_i32_2 = arith.constant 0 : i32
    return %arg0, %c0_i32, %c0_i32_0, %c0_i32_1 : i32, i32, i32, i32
  }
  func.func @transform_1(%arg0: i32, %arg1: i32) -> (i32, i32) {
    %c0_i32 = arith.constant 0 : i32
    %c0_i32_0 = arith.constant 0 : i32
    %c0_i32_1 = arith.constant 0 : i32
    return %c0_i32, %c0_i32_0 : i32, i32
  }
  func.func @transform_2(%arg0: i32, %arg1: i32) -> (i32, i32) {
    %c0_i32 = arith.constant 0 : i32
    %c0_i32_0 = arith.constant 0 : i32
    %c0_i32_1 = arith.constant 0 : i32
    return %c0_i32, %c0_i32_0 : i32, i32
  }
  func.func @transform_3(%arg0: i32, %arg1: i32) -> (i32, i32) {
    %c0_i32 = arith.constant 0 : i32
    %c0_i32_0 = arith.constant 0 : i32
    %c0_i32_1 = arith.constant 0 : i32
    return %c0_i32, %c0_i32_0 : i32, i32
  }
  func.func @transform_4(%arg0: i32, %arg1: i32) -> (i32, i32) {
    %c0_i32 = arith.constant 0 : i32
    %c0_i32_0 = arith.constant 0 : i32
    %c0_i32_1 = arith.constant 0 : i32
    return %c0_i32, %c0_i32_0 : i32, i32
  }
  func.func @transform_5(%arg0: i32, %arg1: i32) -> (i32, i32) {
    %c0_i32 = arith.constant 0 : i32
    %c0_i32_0 = arith.constant 0 : i32
    return %arg1, %c0_i32 : i32, i32
  }
  func.func @transform_6(%arg0: i32, %arg1: i32) -> (i32, i32) {
    %c0_i32 = arith.constant 0 : i32
    %c0_i32_0 = arith.constant 0 : i32
    return %arg1, %c0_i32 : i32, i32
  }
  func.func @transform_7(%arg0: i32, %arg1: i32) -> (i32, i32, i32) {
    %c0_i32 = arith.constant 0 : i32
    %c0_i32_0 = arith.constant 0 : i32
    return %arg0, %arg1, %c0_i32 : i32, i32, i32
  }
  func.func @transform_8(%arg0: i32, %arg1: i32) -> (i32, i32, i32) {
    %c0_i32 = arith.constant 0 : i32
    %c0_i32_0 = arith.constant 0 : i32
    return %arg0, %arg1, %c0_i32 : i32, i32, i32
  }
  func.func @transform_9(%arg0: i32, %arg1: i32) -> (i32, i32, i32) {
    %c0_i32 = arith.constant 0 : i32
    %c0_i32_0 = arith.constant 0 : i32
    return %arg0, %arg1, %c0_i32 : i32, i32, i32
  }
  func.func @transform_10(%arg0: i32, %arg1: i32) -> (i32, i32, i32) {
    %c0_i32 = arith.constant 0 : i32
    %c0_i32_0 = arith.constant 0 : i32
    return %arg0, %arg1, %c0_i32 : i32, i32, i32
  }
}

module attributes {stable_mosaic.version = 11 : i64} {
  func.func @fused_conv_kernel(%arg0: i32, %arg1: i32, %arg2: memref<1x1x8x150xf32, #tpu.memory_space<vmem>>, %arg3: memref<8x1xf32, #tpu.memory_space<vmem>>, %arg4: memref<8x1xf32, #tpu.memory_space<vmem>>, %arg5: memref<1x150xf32, #tpu.memory_space<vmem>>, %arg6: memref<8x72xf32, #tpu.memory_space<vmem>>, %arg7: memref<1x8x128xf32, #tpu.memory_space<vmem>>) attributes {dimension_semantics = [#tpu.dimension_semantics<parallel>, #tpu.dimension_semantics<parallel>], iteration_bounds = array<i64: 2, 1>, scalar_prefetch = 0 : i64, scratch_operands = 0 : i64, tpu.core_type = #tpu.core_type<tc>, window_params = [{transform_indices = @transform_0, window_bounds = array<i64: 1, 1, 8, 150>}, {pipeline_mode = #tpu.pipeline_mode<synchronous>, transform_indices = @transform_1, window_bounds = array<i64: 8, 1>}, {pipeline_mode = #tpu.pipeline_mode<synchronous>, transform_indices = @transform_2, window_bounds = array<i64: 8, 1>}, {pipeline_mode = #tpu.pipeline_mode<synchronous>, transform_indices = @transform_3, window_bounds = array<i64: 1, 150>}, {transform_indices = @transform_4, window_bounds = array<i64: 8, 72>}, {transform_indices = @transform_5, window_bounds = array<i64: 1, 8, 128>}]} {
    %c0 = arith.constant 0 : index
    %c0_0 = arith.constant 0 : index
    %c0_1 = arith.constant 0 : index
    %c0_2 = arith.constant 0 : index
    %0 = vector.load %arg2[%c0, %c0_0, %c0_1, %c0_2] : memref<1x1x8x150xf32, #tpu.memory_space<vmem>>, vector<1x1x8x150xf32>
    %1 = vector.shape_cast %0 : vector<1x1x8x150xf32> to vector<1x8x150xf32>
    %c0_3 = arith.constant 0 : index
    %c0_4 = arith.constant 0 : index
    %2 = vector.load %arg3[%c0_3, %c0_4] : memref<8x1xf32, #tpu.memory_space<vmem>>, vector<8x1xf32>
    %3 = vector.shape_cast %2 : vector<8x1xf32> to vector<1x8x1xf32>
    %4 = vector.broadcast %3 : vector<1x8x1xf32> to vector<1x8x150xf32>
    %5 = arith.mulf %1, %4 : vector<1x8x150xf32>
    %c0_5 = arith.constant 0 : index
    %c0_6 = arith.constant 0 : index
    %6 = vector.load %arg4[%c0_5, %c0_6] : memref<8x1xf32, #tpu.memory_space<vmem>>, vector<8x1xf32>
    %7 = vector.shape_cast %6 : vector<8x1xf32> to vector<1x8x1xf32>
    %8 = vector.broadcast %7 : vector<1x8x1xf32> to vector<1x8x150xf32>
    %9 = arith.addf %5, %8 : vector<1x8x150xf32>
    %cst = arith.constant 0.000000e+00 : f32
    %10 = vector.broadcast %cst : f32 to vector<1x8x150xf32>
    %11 = arith.maximumf %9, %10 : vector<1x8x150xf32>
    %c0_7 = arith.constant 0 : index
    %c0_8 = arith.constant 0 : index
    %12 = vector.load %arg5[%c0_7, %c0_8] : memref<1x150xf32, #tpu.memory_space<vmem>>, vector<1x150xf32>
    %13 = vector.shape_cast %12 : vector<1x150xf32> to vector<1x1x150xf32>
    %14 = vector.broadcast %13 : vector<1x1x150xf32> to vector<1x8x150xf32>
    %15 = arith.mulf %11, %14 : vector<1x8x150xf32>
    %c0_9 = arith.constant 0 : index
    %c0_10 = arith.constant 0 : index
    %16 = vector.load %arg6[%c0_9, %c0_10] : memref<8x72xf32, #tpu.memory_space<vmem>>, vector<8x72xf32>
    %17 = vector.extract_strided_slice %15 {offsets = [0, 0, 0], sizes = [1, 8, 128], strides = [1, 1, 1]} : vector<1x8x150xf32> to vector<1x8x128xf32>
    %18 = vector.shape_cast %17 : vector<1x8x128xf32> to vector<8x128xf32>
    %19 = vector.extract_strided_slice %15 {offsets = [0, 0, 1], sizes = [1, 8, 128], strides = [1, 1, 1]} : vector<1x8x150xf32> to vector<1x8x128xf32>
    %20 = vector.shape_cast %19 : vector<1x8x128xf32> to vector<8x128xf32>
    %21 = vector.extract_strided_slice %15 {offsets = [0, 0, 2], sizes = [1, 8, 128], strides = [1, 1, 1]} : vector<1x8x150xf32> to vector<1x8x128xf32>
    %22 = vector.shape_cast %21 : vector<1x8x128xf32> to vector<8x128xf32>
    %23 = vector.extract_strided_slice %15 {offsets = [0, 0, 10], sizes = [1, 8, 128], strides = [1, 1, 1]} : vector<1x8x150xf32> to vector<1x8x128xf32>
    %24 = vector.shape_cast %23 : vector<1x8x128xf32> to vector<8x128xf32>
    %25 = vector.extract_strided_slice %15 {offsets = [0, 0, 11], sizes = [1, 8, 128], strides = [1, 1, 1]} : vector<1x8x150xf32> to vector<1x8x128xf32>
    %26 = vector.shape_cast %25 : vector<1x8x128xf32> to vector<8x128xf32>
    %27 = vector.extract_strided_slice %15 {offsets = [0, 0, 12], sizes = [1, 8, 128], strides = [1, 1, 1]} : vector<1x8x150xf32> to vector<1x8x128xf32>
    %28 = vector.shape_cast %27 : vector<1x8x128xf32> to vector<8x128xf32>
    %29 = vector.extract_strided_slice %15 {offsets = [0, 0, 20], sizes = [1, 8, 128], strides = [1, 1, 1]} : vector<1x8x150xf32> to vector<1x8x128xf32>
    %30 = vector.shape_cast %29 : vector<1x8x128xf32> to vector<8x128xf32>
    %31 = vector.extract_strided_slice %15 {offsets = [0, 0, 21], sizes = [1, 8, 128], strides = [1, 1, 1]} : vector<1x8x150xf32> to vector<1x8x128xf32>
    %32 = vector.shape_cast %31 : vector<1x8x128xf32> to vector<8x128xf32>
    %33 = vector.extract_strided_slice %15 {offsets = [0, 0, 22], sizes = [1, 8, 128], strides = [1, 1, 1]} : vector<1x8x150xf32> to vector<1x8x128xf32>
    %34 = vector.shape_cast %33 : vector<1x8x128xf32> to vector<8x128xf32>
    %35 = tpu.concatenate %18, %20, %22, %24, %26, %28, %30, %32, %34 in 0 : vector<8x128xf32>, vector<8x128xf32>, vector<8x128xf32>, vector<8x128xf32>, vector<8x128xf32>, vector<8x128xf32>, vector<8x128xf32>, vector<8x128xf32>, vector<8x128xf32> -> vector<72x128xf32>
    %cst_11 = arith.constant dense<0.000000e+00> : vector<8x128xf32>
    %36 = tpu.matmul %16, %35, %cst_11 {dimension_numbers = #tpu.dot_dimension_numbers<[1], [0], [0], [1], [0, 0, 1, 1], [], []>} : vector<8x72xf32>, vector<72x128xf32>, vector<8x128xf32> -> vector<8x128xf32>
    %c0_12 = arith.constant 0 : index
    %c0_13 = arith.constant 0 : index
    %c0_14 = arith.constant 0 : index
    %37 = vector.load %arg7[%c0_12, %c0_13, %c0_14] : memref<1x8x128xf32, #tpu.memory_space<vmem>>, vector<1x8x128xf32>
    %38 = vector.shape_cast %37 : vector<1x8x128xf32> to vector<8x128xf32>
    %39 = vector.shape_cast %36 : vector<8x128xf32> to vector<1x8x128xf32>
    tpu.vector_store %arg7[%c0_12, %c0_13, %c0_14], %39 {strides = array<i32>} : memref<1x8x128xf32, #tpu.memory_space<vmem>>, vector<1x8x128xf32>,
    return
  }
  func.func @transform_0(%arg0: i32, %arg1: i32) -> (i32, i32, i32, i32) {
    %c0_i32 = arith.constant 0 : i32
    %c0_i32_0 = arith.constant 0 : i32
    %c0_i32_1 = arith.constant 0 : i32
    %c0_i32_2 = arith.constant 0 : i32
    return %arg0, %c0_i32, %c0_i32_0, %c0_i32_1 : i32, i32, i32, i32
  }
  func.func @transform_1(%arg0: i32, %arg1: i32) -> (i32, i32) {
    %c0_i32 = arith.constant 0 : i32
    %c0_i32_0 = arith.constant 0 : i32
    %c0_i32_1 = arith.constant 0 : i32
    return %c0_i32, %c0_i32_0 : i32, i32
  }
  func.func @transform_2(%arg0: i32, %arg1: i32) -> (i32, i32) {
    %c0_i32 = arith.constant 0 : i32
    %c0_i32_0 = arith.constant 0 : i32
    %c0_i32_1 = arith.constant 0 : i32
    return %c0_i32, %c0_i32_0 : i32, i32
  }
  func.func @transform_3(%arg0: i32, %arg1: i32) -> (i32, i32) {
    %c0_i32 = arith.constant 0 : i32
    %c0_i32_0 = arith.constant 0 : i32
    %c0_i32_1 = arith.constant 0 : i32
    return %c0_i32, %c0_i32_0 : i32, i32
  }
  func.func @transform_4(%arg0: i32, %arg1: i32) -> (i32, i32) {
    %c0_i32 = arith.constant 0 : i32
    %c0_i32_0 = arith.constant 0 : i32
    return %arg1, %c0_i32 : i32, i32
  }
  func.func @transform_5(%arg0: i32, %arg1: i32) -> (i32, i32, i32) {
    %c0_i32 = arith.constant 0 : i32
    %c0_i32_0 = arith.constant 0 : i32
    return %arg0, %arg1, %c0_i32 : i32, i32, i32
  }
}

</mosaic_0001>

<llo_original>
// kernel: preact_block.3
$region0: #{preact_block.3}
  #allocation0 [shape = 'u32[]', space=smem, size = 0x4, offset = 0x4, fixed_abs, tag = 'smem constant byte address 0x4 - core index']
  #allocation1 [shape = 'u32[72,128]{1,0:T(1,128)}', space=vmem, size = 0x9000, scoped, tag = 'internal scratch']
  %s0 = inlined_call_operand.vmem [shape: f32[2,4,256], index: 0, kind: input, shape index: {}]
  %s1 = inlined_call_operand.vmem [shape: f32[4,1], index: 1, kind: output, shape index: {0}]
  %s2 = inlined_call_operand.vmem [shape: f32[4,1], index: 2, kind: output, shape index: {1}]
  %3 = xla_tuple %s1, %s2
  %s4 = sld [smem:[#allocation0]]
  $region49: #{preact_block.3} parent=0
    _
  %s6 = ssub.s32 1, %s4
  %s7 = scalar_select 0, %s6, %s4
  loop: start=0, step=1, limit=4
  $region2: #{preact_block.3} parent=0 // loop_pre_header
    _
  $region3: #{preact_block.3} parent=0 // loop_header
    %s9 = sphi 0, %s13
    %p10 = scmp.ge.s32.totalorder %s9, 4
    %s19 = sphi 0, %s21
    %s22 = sphi 0, %s19
    %s23 = sphi 0, %s22
    %s39 = sphi 0, %s23
    %s43 = sphi 0, %s43
    %s45 = sphi 0, %s43
    %s46 = sphi 0, %s45
    %s60 = sphi 0, %s46
    %s64 = sphi 0, %s64
    %s66 = sphi 0, %s64
    %s67 = sphi 0, %s66
    %s81 = sphi 0, %s67
  $region4: #{preact_block.3} parent=0 // loop_header_branch
    %12 = sbr.rel (%p10) target = $region8
  $region5: #{preact_block.3} parent=0 // loop_body
    %s14 = ssub.s32 %s9, 1
    %s15 = ssub.s32 %s9, 2
    %s16 = sadd.s32 %s9, 1
    %s17 = ssub.s32 %s9, %s16
    %p18 = scmp.eq.s32.totalorder %s17, 0
    %s20 = sadd.s32 %s19, 1
    %s21 = scalar_select %p18, %s19, %s20
    %p24 = pneg %p18
    %p25 = scmp.eq.s32.totalorder %s9, 1
    %p26 = por %p24, %p25
    %p27 = scmp.ne.s32.totalorder %s19, %s22
    %p28 = scmp.eq.s32.totalorder %s9, 0
    %p29 = por %p27, %p28
    %p30 = scmp.ne.s32.totalorder %s19, %s22
    %p31 = scmp.eq.s32.totalorder %s14, 1
    %p32 = por %p30, %p31
    %p33 = scmp.ne.s32.totalorder %s22, %s23
    %p34 = scmp.eq.s32.totalorder %s14, 0
    %p35 = por %p33, %p34
    %p36 = scmp.ne.s32.totalorder %s22, %s23
    %p37 = scmp.eq.s32.totalorder %s15, 1
    %p38 = por %p36, %p37
    %p40 = scmp.ne.s32.totalorder %s23, %s39
    %p41 = scmp.eq.s32.totalorder %s15, 0
    %p42 = por %p40, %p41
    %s44 = sadd.s32 %s43, 1
    %p47 = scmp.eq.s32.totalorder %s9, 1
    %p48 = scmp.ne.s32.totalorder %s43, %s45
    %p49 = scmp.eq.s32.totalorder %s9, 0
    %p50 = por %p48, %p49
    %p51 = scmp.ne.s32.totalorder %s43, %s45
    %p52 = scmp.eq.s32.totalorder %s14, 1
    %p53 = por %p51, %p52
    %p54 = scmp.ne.s32.totalorder %s45, %s46
    %p55 = scmp.eq.s32.totalorder %s14, 0
    %p56 = por %p54, %p55
    %p57 = scmp.ne.s32.totalorder %s45, %s46
    %p58 = scmp.eq.s32.totalorder %s15, 1
    %p59 = por %p57, %p58
    %p61 = scmp.ne.s32.totalorder %s46, %s60
    %p62 = scmp.eq.s32.totalorder %s15, 0
    %p63 = por %p61, %p62
    %s65 = sadd.s32 %s64, 1
    %p68 = scmp.eq.s32.totalorder %s9, 1
    %p69 = scmp.ne.s32.totalorder %s64, %s66
    %p70 = scmp.eq.s32.totalorder %s9, 0
    %p71 = por %p69, %p70
    %p72 = scmp.ne.s32.totalorder %s64, %s66
    %p73 = scmp.eq.s32.totalorder %s14, 1
    %p74 = por %p72, %p73
    %p75 = scmp.ne.s32.totalorder %s66, %s67
    %p76 = scmp.eq.s32.totalorder %s14, 0
    %p77 = por %p75, %p76
    %p78 = scmp.ne.s32.totalorder %s66, %s67
    %p79 = scmp.eq.s32.totalorder %s15, 1
    %p80 = por %p78, %p79
    %p82 = scmp.ne.s32.totalorder %s67, %s81
    %p83 = scmp.eq.s32.totalorder %s15, 0
    %p84 = por %p82, %p83
    %p85 = scmp.le.s32.totalorder 1, %s9
    %p86 = scmp.lt.s32.totalorder %s9, 3
    %p87 = pnand %p85, %p86
    %p88 = pneg %p87
    // Predicated region
    $region9: #{preact_block.3} parent=5 // pred_check
      _
    $region10: #{preact_block.3} parent=5 // pred_check_branch
      %90 = sbr.rel (%p87) target = $region12
    $region11: #{preact_block.3} parent=5 // pred_region
      %s91 = ssub.s32 %s9, 1
    $region12: #{preact_block.3} parent=5 // pred_fallthru
      _
    %p92 = scmp.lt.s32.totalorder %s9, 2
    // Predicated region
    $region13: #{preact_block.3} parent=5 // pred_check
      %p93 = pneg %p92
    $region14: #{preact_block.3} parent=5 // pred_check_branch
      %95 = sbr.rel (%p93) target = $region16
    $region15: #{preact_block.3} parent=5 // pred_region
      // Predicated region
      $region17: #{preact_block.3} parent=15 // pred_check
        %p96 = pneg %p29
      $region18: #{preact_block.3} parent=15 // pred_check_branch
        %98 = sbr.rel (%p96) target = $region20
      $region19: #{preact_block.3} parent=15 // pred_region
        %p99 = scmp.lt.s32.totalorder %s9, 1
        %s100 = scalar_select %p99, %s9, 1
        %s101 = smul.addr %s100, 2
        %s102 = smul.addr %s101, 4
        %s103 = scalar_lea.vmem %s0, %s102
      $region20: #{preact_block.3} parent=15 // pred_fallthru
        _
    $region16: #{preact_block.3} parent=5 // pred_fallthru
      _
    %p104 = scmp.le.s32.totalorder 1, %s9
    %p105 = scmp.lt.s32.totalorder %s9, 3
    %p106 = pnand %p104, %p105
    %p107 = pneg %p106
    // Predicated region
    $region21: #{preact_block.3} parent=5 // pred_check
      _
    $region22: #{preact_block.3} parent=5 // pred_check_branch
      %109 = sbr.rel (%p106) target = $region24
    $region23: #{preact_block.3} parent=5 // pred_region
      %s110 = ssub.s32 %s9, 1
      %p111 = scmp.lt.s32.totalorder %s14, 1
      %s112 = scalar_select %p111, %s14, 1
      %s113 = smul.addr %s112, 2
      %s114 = smul.addr %s113, 4
      %s115 = scalar_lea.vmem %s0, %s114
      %p116 = pneg %p35
      %p117 = pneg %p32
      %p118 = pneg %p56
      %p119 = pneg %p53
      %p120 = pneg %p77
      %p121 = pneg %p74
      %p122 = scmp.lt.s32.totalorder %s14, 1
      %s123 = scalar_select %p122, %s14, 1
      %s124 = smul.addr %s123, 2
      %s125 = smul.addr %s124, 4
      %s126 = scalar_lea.vmem %s0, %s125
      %p127 = scmp.eq.s32.totalorder %s14, 0
      // Predicated region
      $region25: #{preact_block.3} parent=23 // pred_check
        %p128 = pneg %p127
      $region26: #{preact_block.3} parent=23 // pred_check_branch
        %130 = sbr.rel (%p128) target = $region28
      $region27: #{preact_block.3} parent=23 // pred_region
        %vm131 = vcmask 3072
        %132 = vst.msk [vmem:[%s1] sm:$0xf] %vm131, 0.0
        %133 = vst.msk [vmem:[%s2] sm:$0xf] %vm131, 0.0
      $region28: #{preact_block.3} parent=23 // pred_fallthru
        _
      %v134 = vld [vmem:[%s126] sm:$0xff]
      %v135 = vld [vmem:[%s1] sm:$0xf]
      %137 = vst [vmem:[#allocation1] ss:$2 sm:$0xff] %v134
      %v138 = vld.sshfl [vmem:[#allocation1] sm:$0xff pattern:$0x75316420]
      %v139 = vld.sshfl [vmem:[#allocation1 + $0x8] sm:$0xff pattern:$0x75316420]
      %vm142 = vcmask 1043456
      %v143 = vsel %vm142, %v138, 0.0
      %v144 = vsel %vm142, %v139, 0.0
      %v145 = vadd.f32 %v143, %v144
      %146 = vadd.xlane.f32.xlu0 %v145
      %v147 = vpop.xlane.xlu0 %146
      %v148 = vadd.f32 %v135, %v147
      %vm149 = vcmask 3072
      %150 = vst.msk [vmem:[%s1] sm:$0xf] %vm149, %v148
      %v151 = vld [vmem:[%s2] sm:$0xf]
      %v152 = vmul.f32 %v134, %v134
      %154 = vst [vmem:[#allocation1] ss:$2 sm:$0xff] %v152
      %v155 = vld.sshfl [vmem:[#allocation1] sm:$0xff pattern:$0x75316420]
      %v156 = vld.sshfl [vmem:[#allocation1 + $0x8] sm:$0xff pattern:$0x75316420]
      %v159 = vsel %vm142, %v155, 0.0
      %v160 = vsel %vm142, %v156, 0.0
      %v161 = vadd.f32 %v159, %v160
      %162 = vadd.xlane.f32.xlu0 %v161
      %v163 = vpop.xlane.xlu0 %162
      %v164 = vadd.f32 %v151, %v163
      %165 = vst.msk [vmem:[%s2] sm:$0xf] %vm149, %v164
      // Predicated region
      $region29: #{preact_block.3} parent=23 // pred_check
        %p166 = pneg %p53
      $region30: #{preact_block.3} parent=23 // pred_check_branch
        %168 = sbr.rel (%p166) target = $region32
      $region31: #{preact_block.3} parent=23 // pred_region
        _
      $region32: #{preact_block.3} parent=23 // pred_fallthru
        _
      // Predicated region
      $region33: #{preact_block.3} parent=23 // pred_check
        %p169 = pneg %p74
      $region34: #{preact_block.3} parent=23 // pred_check_branch
        %171 = sbr.rel (%p169) target = $region36
      $region35: #{preact_block.3} parent=23 // pred_region
        _
      $region36: #{preact_block.3} parent=23 // pred_fallthru
        _
      // Predicated region
      $region37: #{preact_block.3} parent=23 // pred_check
        %p172 = pneg %p53
      $region38: #{preact_block.3} parent=23 // pred_check_branch
        %174 = sbr.rel (%p172) target = $region40
      $region39: #{preact_block.3} parent=23 // pred_region
        _
      $region40: #{preact_block.3} parent=23 // pred_fallthru
        _
      // Predicated region
      $region41: #{preact_block.3} parent=23 // pred_check
        %p175 = pneg %p74
      $region42: #{preact_block.3} parent=23 // pred_check_branch
        %177 = sbr.rel (%p175) target = $region44
      $region43: #{preact_block.3} parent=23 // pred_region
        _
      $region44: #{preact_block.3} parent=23 // pred_fallthru
        _
    $region24: #{preact_block.3} parent=5 // pred_fallthru
      _
    %p178 = scmp.le.s32.totalorder 2, %s9
    // Predicated region
    $region45: #{preact_block.3} parent=5 // pred_check
      %p179 = pneg %p178
    $region46: #{preact_block.3} parent=5 // pred_check_branch
      %181 = sbr.rel (%p179) target = $region48
    $region47: #{preact_block.3} parent=5 // pred_region
      %s182 = ssub.s32 %s9, 2
    $region48: #{preact_block.3} parent=5 // pred_fallthru
      _
  $region6: #{preact_block.3} parent=0 // loop_footer
    %s13 = sadd.s32 1, %s9
  $region7: #{preact_block.3} parent=0 // loop_footer_branch
    %8 = sbr.rel target = $region3
  $region8: #{preact_block.3} parent=0 // loop_exit
    _

// kernel: preact_block.4
$region0: #{preact_block.4}
  #allocation0 [shape = 'u32[]', space=smem, size = 0x4, offset = 0x4, fixed_abs, tag = 'smem constant byte address 0x4 - core index']
  #allocation1 [shape = 'u32[72,128]{1,0:T(1,128)}', space=vmem, size = 0x9000, scoped, tag = 'internal scratch']
  %s0 = inlined_call_operand.vmem [shape: f32[2,4,8,138], index: 0, kind: input, shape index: {}]
  %s1 = inlined_call_operand.vmem [shape: f32[8,1], index: 1, kind: input, shape index: {}]
  %s2 = inlined_call_operand.vmem [shape: f32[8,1], index: 2, kind: input, shape index: {}]
  %s3 = inlined_call_operand.vmem [shape: f32[1,138], index: 3, kind: input, shape index: {}]
  %s4 = inlined_call_operand.vmem [shape: f32[1,128], index: 4, kind: input, shape index: {}]
  %s5 = inlined_call_operand.vmem [shape: f32[8,72], index: 5, kind: input, shape index: {}]
  %s6 = inlined_call_operand.vmem [shape: f32[8,72], index: 6, kind: input, shape index: {}]
  %s7 = inlined_call_operand.vmem [shape: f32[2,8,128], index: 7, kind: output, shape index: {0}]
  %s8 = inlined_call_operand.vmem [shape: f32[2,8,128], index: 8, kind: output, shape index: {1}]
  %s9 = inlined_call_operand.vmem [shape: f32[2,8,1], index: 9, kind: output, shape index: {2}]
  %s10 = inlined_call_operand.vmem [shape: f32[2,8,1], index: 10, kind: output, shape index: {3}]
  %11 = xla_tuple %s7, %s8, %s9, %s10
  %s12 = sld [smem:[#allocation0]]
  $region85: #{preact_block.4} parent=0
    _
  %s14 = ssub.s32 1, %s12
  %s15 = scalar_select 0, %s14, %s12
  loop: start=0, step=1, limit=4
  $region2: #{preact_block.4} parent=0 // loop_pre_header
    _
  $region3: #{preact_block.4} parent=0 // loop_header
    %s17 = sphi 0, %s21
    %p18 = scmp.ge.s32.totalorder %s17, 4
    %s24 = sphi 0, %s36
    %s25 = sphi 0, %s32
    %s26 = sphi 0, %s24
    %s27 = sphi 0, %s25
    %s28 = sphi 0, %s26
    %s29 = sphi 0, %s27
    %s39 = sphi 0, %s41
    %s42 = sphi 0, %s39
    %s43 = sphi 0, %s42
    %s59 = sphi 0, %s43
    %s63 = sphi 0, %s63
    %s65 = sphi 0, %s63
    %s66 = sphi 0, %s65
    %s80 = sphi 0, %s66
    %s84 = sphi 0, %s84
    %s86 = sphi 0, %s84
    %s87 = sphi 0, %s86
    %s101 = sphi 0, %s87
    %s105 = sphi 0, %s105
    %s107 = sphi 0, %s105
    %s108 = sphi 0, %s107
    %s122 = sphi 0, %s108
    %s126 = sphi 0, %s126
    %s128 = sphi 0, %s126
    %s129 = sphi 0, %s128
    %s143 = sphi 0, %s129
    %s149 = sphi 0, %s151
    %s152 = sphi 0, %s149
    %s153 = sphi 0, %s152
    %s169 = sphi 0, %s153
    %s175 = sphi 0, %s177
    %s178 = sphi 0, %s175
    %s179 = sphi 0, %s178
    %s195 = sphi 0, %s179
    %s203 = sphi 0, %s205
    %s206 = sphi 0, %s203
    %s207 = sphi 0, %s206
    %s223 = sphi 0, %s207
    %s231 = sphi 0, %s233
    %s234 = sphi 0, %s231
    %s235 = sphi 0, %s234
    %s251 = sphi 0, %s235
    %s259 = sphi 0, %s261
    %s262 = sphi 0, %s259
    %s263 = sphi 0, %s262
    %s279 = sphi 0, %s263
    %s287 = sphi 0, %s289
    %s290 = sphi 0, %s287
    %s291 = sphi 0, %s290
    %s307 = sphi 0, %s291
  $region4: #{preact_block.4} parent=0 // loop_header_branch
    %20 = sbr.rel (%p18) target = $region8
  $region5: #{preact_block.4} parent=0 // loop_body
    %s22 = ssub.s32 %s17, 1
    %s23 = ssub.s32 %s17, 2
    %s30 = sadd.s32 1, %s25
    %p31 = scmp.ge.s32.totalorder %s30, 1
    %s32 = scalar_select %p31, 0, %s30
    %s33 = sadd.s32 1, %s24
    %s34 = scalar_select %p31, %s33, %s24
    %p35 = scmp.ge.s32.totalorder %s34, 2
    %s36 = scalar_select %p35, 0, %s34
    %s37 = ssub.s32 %s24, %s36
    %p38 = scmp.eq.s32.totalorder %s37, 0
    %s40 = sadd.s32 %s39, 1
    %s41 = scalar_select %p38, %s39, %s40
    %p44 = pneg %p38
    %p45 = scmp.eq.s32.totalorder %s17, 1
    %p46 = por %p44, %p45
    %p47 = scmp.ne.s32.totalorder %s39, %s42
    %p48 = scmp.eq.s32.totalorder %s17, 0
    %p49 = por %p47, %p48
    %p50 = scmp.ne.s32.totalorder %s39, %s42
    %p51 = scmp.eq.s32.totalorder %s22, 1
    %p52 = por %p50, %p51
    %p53 = scmp.ne.s32.totalorder %s42, %s43
    %p54 = scmp.eq.s32.totalorder %s22, 0
    %p55 = por %p53, %p54
    %p56 = scmp.ne.s32.totalorder %s42, %s43
    %p57 = scmp.eq.s32.totalorder %s23, 1
    %p58 = por %p56, %p57
    %p60 = scmp.ne.s32.totalorder %s43, %s59
    %p61 = scmp.eq.s32.totalorder %s23, 0
    %p62 = por %p60, %p61
    %s64 = sadd.s32 %s63, 1
    %p67 = scmp.eq.s32.totalorder %s17, 1
    %p68 = scmp.ne.s32.totalorder %s63, %s65
    %p69 = scmp.eq.s32.totalorder %s17, 0
    %p70 = por %p68, %p69
    %p71 = scmp.ne.s32.totalorder %s63, %s65
    %p72 = scmp.eq.s32.totalorder %s22, 1
    %p73 = por %p71, %p72
    %p74 = scmp.ne.s32.totalorder %s65, %s66
    %p75 = scmp.eq.s32.totalorder %s22, 0
    %p76 = por %p74, %p75
    %p77 = scmp.ne.s32.totalorder %s65, %s66
    %p78 = scmp.eq.s32.totalorder %s23, 1
    %p79 = por %p77, %p78
    %p81 = scmp.ne.s32.totalorder %s66, %s80
    %p82 = scmp.eq.s32.totalorder %s23, 0
    %p83 = por %p81, %p82
    %s85 = sadd.s32 %s84, 1
    %p88 = scmp.eq.s32.totalorder %s17, 1
    %p89 = scmp.ne.s32.totalorder %s84, %s86
    %p90 = scmp.eq.s32.totalorder %s17, 0
    %p91 = por %p89, %p90
    %p92 = scmp.ne.s32.totalorder %s84, %s86
    %p93 = scmp.eq.s32.totalorder %s22, 1
    %p94 = por %p92, %p93
    %p95 = scmp.ne.s32.totalorder %s86, %s87
    %p96 = scmp.eq.s32.totalorder %s22, 0
    %p97 = por %p95, %p96
    %p98 = scmp.ne.s32.totalorder %s86, %s87
    %p99 = scmp.eq.s32.totalorder %s23, 1
    %p100 = por %p98, %p99
    %p102 = scmp.ne.s32.totalorder %s87, %s101
    %p103 = scmp.eq.s32.totalorder %s23, 0
    %p104 = por %p102, %p103
    %s106 = sadd.s32 %s105, 1
    %p109 = scmp.eq.s32.totalorder %s17, 1
    %p110 = scmp.ne.s32.totalorder %s105, %s107
    %p111 = scmp.eq.s32.totalorder %s17, 0
    %p112 = por %p110, %p111
    %p113 = scmp.ne.s32.totalorder %s105, %s107
    %p114 = scmp.eq.s32.totalorder %s22, 1
    %p115 = por %p113, %p114
    %p116 = scmp.ne.s32.totalorder %s107, %s108
    %p117 = scmp.eq.s32.totalorder %s22, 0
    %p118 = por %p116, %p117
    %p119 = scmp.ne.s32.totalorder %s107, %s108
    %p120 = scmp.eq.s32.totalorder %s23, 1
    %p121 = por %p119, %p120
    %p123 = scmp.ne.s32.totalorder %s108, %s122
    %p124 = scmp.eq.s32.totalorder %s23, 0
    %p125 = por %p123, %p124
    %s127 = sadd.s32 %s126, 1
    %p130 = scmp.eq.s32.totalorder %s17, 1
    %p131 = scmp.ne.s32.totalorder %s126, %s128
    %p132 = scmp.eq.s32.totalorder %s17, 0
    %p133 = por %p131, %p132
    %p134 = scmp.ne.s32.totalorder %s126, %s128
    %p135 = scmp.eq.s32.totalorder %s22, 1
    %p136 = por %p134, %p135
    %p137 = scmp.ne.s32.totalorder %s128, %s129
    %p138 = scmp.eq.s32.totalorder %s22, 0
    %p139 = por %p137, %p138
    %p140 = scmp.ne.s32.totalorder %s128, %s129
    %p141 = scmp.eq.s32.totalorder %s23, 1
    %p142 = por %p140, %p141
    %p144 = scmp.ne.s32.totalorder %s129, %s143
    %p145 = scmp.eq.s32.totalorder %s23, 0
    %p146 = por %p144, %p145
    %s147 = ssub.s32 %s25, %s32
    %p148 = scmp.eq.s32.totalorder %s147, 0
    %s150 = sadd.s32 %s149, 1
    %s151 = scalar_select %p148, %s149, %s150
    %p154 = pneg %p148
    %p155 = scmp.eq.s32.totalorder %s17, 1
    %p156 = por %p154, %p155
    %p157 = scmp.ne.s32.totalorder %s149, %s152
    %p158 = scmp.eq.s32.totalorder %s17, 0
    %p159 = por %p157, %p158
    %p160 = scmp.ne.s32.totalorder %s149, %s152
    %p161 = scmp.eq.s32.totalorder %s22, 1
    %p162 = por %p160, %p161
    %p163 = scmp.ne.s32.totalorder %s152, %s153
    %p164 = scmp.eq.s32.totalorder %s22, 0
    %p165 = por %p163, %p164
    %p166 = scmp.ne.s32.totalorder %s152, %s153
    %p167 = scmp.eq.s32.totalorder %s23, 1
    %p168 = por %p166, %p167
    %p170 = scmp.ne.s32.totalorder %s153, %s169
    %p171 = scmp.eq.s32.totalorder %s23, 0
    %p172 = por %p170, %p171
    %s173 = ssub.s32 %s25, %s32
    %p174 = scmp.eq.s32.totalorder %s173, 0
    %s176 = sadd.s32 %s175, 1
    %s177 = scalar_select %p174, %s175, %s176
    %p180 = pneg %p174
    %p181 = scmp.eq.s32.totalorder %s17, 1
    %p182 = por %p180, %p181
    %p183 = scmp.ne.s32.totalorder %s175, %s178
    %p184 = scmp.eq.s32.totalorder %s17, 0
    %p185 = por %p183, %p184
    %p186 = scmp.ne.s32.totalorder %s175, %s178
    %p187 = scmp.eq.s32.totalorder %s22, 1
    %p188 = por %p186, %p187
    %p189 = scmp.ne.s32.totalorder %s178, %s179
    %p190 = scmp.eq.s32.totalorder %s22, 0
    %p191 = por %p189, %p190
    %p192 = scmp.ne.s32.totalorder %s178, %s179
    %p193 = scmp.eq.s32.totalorder %s23, 1
    %p194 = por %p192, %p193
    %p196 = scmp.ne.s32.totalorder %s179, %s195
    %p197 = scmp.eq.s32.totalorder %s23, 0
    %p198 = por %p196, %p197
    %s199 = ssub.s32 %s24, %s36
    %s200 = ssub.s32 %s25, %s32
    %s201 = sor.u32 %s199, %s200
    %p202 = scmp.eq.s32.totalorder %s201, 0
    %s204 = sadd.s32 %s203, 1
    %s205 = scalar_select %p202, %s203, %s204
    %p208 = pneg %p202
    %p209 = scmp.eq.s32.totalorder %s17, 1
    %p210 = por %p208, %p209
    %p211 = scmp.ne.s32.totalorder %s203, %s206
    %p212 = scmp.eq.s32.totalorder %s17, 0
    %p213 = por %p211, %p212
    %p214 = scmp.ne.s32.totalorder %s203, %s206
    %p215 = scmp.eq.s32.totalorder %s22, 1
    %p216 = por %p214, %p215
    %p217 = scmp.ne.s32.totalorder %s206, %s207
    %p218 = scmp.eq.s32.totalorder %s22, 0
    %p219 = por %p217, %p218
    %p220 = scmp.ne.s32.totalorder %s206, %s207
    %p221 = scmp.eq.s32.totalorder %s23, 1
    %p222 = por %p220, %p221
    %p224 = scmp.ne.s32.totalorder %s207, %s223
    %p225 = scmp.eq.s32.totalorder %s23, 0
    %p226 = por %p224, %p225
    %s227 = ssub.s32 %s24, %s36
    %s228 = ssub.s32 %s25, %s32
    %s229 = sor.u32 %s227, %s228
    %p230 = scmp.eq.s32.totalorder %s229, 0
    %s232 = sadd.s32 %s231, 1
    %s233 = scalar_select %p230, %s231, %s232
    %p236 = pneg %p230
    %p237 = scmp.eq.s32.totalorder %s17, 1
    %p238 = por %p236, %p237
    %p239 = scmp.ne.s32.totalorder %s231, %s234
    %p240 = scmp.eq.s32.totalorder %s17, 0
    %p241 = por %p239, %p240
    %p242 = scmp.ne.s32.totalorder %s231, %s234
    %p243 = scmp.eq.s32.totalorder %s22, 1
    %p244 = por %p242, %p243
    %p245 = scmp.ne.s32.totalorder %s234, %s235
    %p246 = scmp.eq.s32.totalorder %s22, 0
    %p247 = por %p245, %p246
    %p248 = scmp.ne.s32.totalorder %s234, %s235
    %p249 = scmp.eq.s32.totalorder %s23, 1
    %p250 = por %p248, %p249
    %p252 = scmp.ne.s32.totalorder %s235, %s251
    %p253 = scmp.eq.s32.totalorder %s23, 0
    %p254 = por %p252, %p253
    %s255 = ssub.s32 %s24, %s36
    %s256 = ssub.s32 %s25, %s32
    %s257 = sor.u32 %s255, %s256
    %p258 = scmp.eq.s32.totalorder %s257, 0
    %s260 = sadd.s32 %s259, 1
    %s261 = scalar_select %p258, %s259, %s260
    %p264 = pneg %p258
    %p265 = scmp.eq.s32.totalorder %s17, 1
    %p266 = por %p264, %p265
    %p267 = scmp.ne.s32.totalorder %s259, %s262
    %p268 = scmp.eq.s32.totalorder %s17, 0
    %p269 = por %p267, %p268
    %p270 = scmp.ne.s32.totalorder %s259, %s262
    %p271 = scmp.eq.s32.totalorder %s22, 1
    %p272 = por %p270, %p271
    %p273 = scmp.ne.s32.totalorder %s262, %s263
    %p274 = scmp.eq.s32.totalorder %s22, 0
    %p275 = por %p273, %p274
    %p276 = scmp.ne.s32.totalorder %s262, %s263
    %p277 = scmp.eq.s32.totalorder %s23, 1
    %p278 = por %p276, %p277
    %p280 = scmp.ne.s32.totalorder %s263, %s279
    %p281 = scmp.eq.s32.totalorder %s23, 0
    %p282 = por %p280, %p281
    %s283 = ssub.s32 %s24, %s36
    %s284 = ssub.s32 %s25, %s32
    %s285 = sor.u32 %s283, %s284
    %p286 = scmp.eq.s32.totalorder %s285, 0
    %s288 = sadd.s32 %s287, 1
    %s289 = scalar_select %p286, %s287, %s288
    %p292 = pneg %p286
    %p293 = scmp.eq.s32.totalorder %s17, 1
    %p294 = por %p292, %p293
    %p295 = scmp.ne.s32.totalorder %s287, %s290
    %p296 = scmp.eq.s32.totalorder %s17, 0
    %p297 = por %p295, %p296
    %p298 = scmp.ne.s32.totalorder %s287, %s290
    %p299 = scmp.eq.s32.totalorder %s22, 1
    %p300 = por %p298, %p299
    %p301 = scmp.ne.s32.totalorder %s290, %s291
    %p302 = scmp.eq.s32.totalorder %s22, 0
    %p303 = por %p301, %p302
    %p304 = scmp.ne.s32.totalorder %s290, %s291
    %p305 = scmp.eq.s32.totalorder %s23, 1
    %p306 = por %p304, %p305
    %p308 = scmp.ne.s32.totalorder %s291, %s307
    %p309 = scmp.eq.s32.totalorder %s23, 0
    %p310 = por %p308, %p309
    %p311 = scmp.le.s32.totalorder 1, %s17
    %p312 = scmp.lt.s32.totalorder %s17, 3
    %p313 = pnand %p311, %p312
    %p314 = pneg %p313
    // Predicated region
    $region9: #{preact_block.4} parent=5 // pred_check
      _
    $region10: #{preact_block.4} parent=5 // pred_check_branch
      %316 = sbr.rel (%p313) target = $region12
    $region11: #{preact_block.4} parent=5 // pred_region
      %s317 = ssub.s32 %s17, 1
      // Predicated region
      $region13: #{preact_block.4} parent=11 // pred_check
        %p318 = pneg %p76
      $region14: #{preact_block.4} parent=11 // pred_check_branch
        %320 = sbr.rel (%p318) target = $region16
      $region15: #{preact_block.4} parent=11 // pred_region
        _
      $region16: #{preact_block.4} parent=11 // pred_fallthru
        _
      // Predicated region
      $region17: #{preact_block.4} parent=11 // pred_check
        %p321 = pneg %p97
      $region18: #{preact_block.4} parent=11 // pred_check_branch
        %323 = sbr.rel (%p321) target = $region20
      $region19: #{preact_block.4} parent=11 // pred_region
        _
      $region20: #{preact_block.4} parent=11 // pred_fallthru
        _
      // Predicated region
      $region21: #{preact_block.4} parent=11 // pred_check
        %p324 = pneg %p118
      $region22: #{preact_block.4} parent=11 // pred_check_branch
        %326 = sbr.rel (%p324) target = $region24
      $region23: #{preact_block.4} parent=11 // pred_region
        _
      $region24: #{preact_block.4} parent=11 // pred_fallthru
        _
      // Predicated region
      $region25: #{preact_block.4} parent=11 // pred_check
        %p327 = pneg %p139
      $region26: #{preact_block.4} parent=11 // pred_check_branch
        %329 = sbr.rel (%p327) target = $region28
      $region27: #{preact_block.4} parent=11 // pred_region
        _
      $region28: #{preact_block.4} parent=11 // pred_fallthru
        _
      // Predicated region
      $region29: #{preact_block.4} parent=11 // pred_check
        %p330 = pneg %p165
      $region30: #{preact_block.4} parent=11 // pred_check_branch
        %332 = sbr.rel (%p330) target = $region32
      $region31: #{preact_block.4} parent=11 // pred_region
        %p333 = scmp.lt.s32.totalorder %s27, 0
        %s334 = scalar_select %p333, %s27, 0
        %s335 = smul.addr %s334, 8
        %s336 = scalar_lea.vmem %s5, %s335
      $region32: #{preact_block.4} parent=11 // pred_fallthru
        _
      // Predicated region
      $region33: #{preact_block.4} parent=11 // pred_check
        %p337 = pneg %p191
      $region34: #{preact_block.4} parent=11 // pred_check_branch
        %339 = sbr.rel (%p337) target = $region36
      $region35: #{preact_block.4} parent=11 // pred_region
        %p340 = scmp.lt.s32.totalorder %s27, 0
        %s341 = scalar_select %p340, %s27, 0
        %s342 = smul.addr %s341, 8
        %s343 = scalar_lea.vmem %s6, %s342
      $region36: #{preact_block.4} parent=11 // pred_fallthru
        _
    $region12: #{preact_block.4} parent=5 // pred_fallthru
      _
    %p344 = scmp.lt.s32.totalorder %s17, 2
    // Predicated region
    $region37: #{preact_block.4} parent=5 // pred_check
      %p345 = pneg %p344
    $region38: #{preact_block.4} parent=5 // pred_check_branch
      %347 = sbr.rel (%p345) target = $region40
    $region39: #{preact_block.4} parent=5 // pred_region
      // Predicated region
      $region41: #{preact_block.4} parent=39 // pred_check
        %p348 = pneg %p49
      $region42: #{preact_block.4} parent=39 // pred_check_branch
        %350 = sbr.rel (%p348) target = $region44
      $region43: #{preact_block.4} parent=39 // pred_region
        %p351 = scmp.lt.s32.totalorder %s24, 1
        %s352 = scalar_select %p351, %s24, 1
        %s353 = smul.addr %s352, 8
        %s354 = smul.addr %s353, 8
        %s355 = scalar_lea.vmem %s0, %s354
      $region44: #{preact_block.4} parent=39 // pred_fallthru
        _
    $region40: #{preact_block.4} parent=5 // pred_fallthru
      _
    %p356 = scmp.le.s32.totalorder 1, %s17
    %p357 = scmp.lt.s32.totalorder %s17, 3
    %p358 = pnand %p356, %p357
    %p359 = pneg %p358
    // Predicated region
    $region45: #{preact_block.4} parent=5 // pred_check
      _
    $region46: #{preact_block.4} parent=5 // pred_check_branch
      %361 = sbr.rel (%p358) target = $region48
    $region47: #{preact_block.4} parent=5 // pred_region
      %s362 = ssub.s32 %s17, 1
      %p363 = scmp.lt.s32.totalorder %s26, 1
      %s364 = scalar_select %p363, %s26, 1
      %s365 = smul.addr %s364, 8
      %s366 = smul.addr %s365, 8
      %s367 = scalar_lea.vmem %s0, %s366
      %p368 = pneg %p55
      %p369 = pneg %p52
      %p370 = pneg %p76
      %p371 = pneg %p73
      %p372 = pneg %p97
      %p373 = pneg %p94
      %p374 = pneg %p118
      %p375 = pneg %p115
      %p376 = pneg %p139
      %p377 = pneg %p136
      %p378 = scmp.lt.s32.totalorder %s27, 0
      %s379 = scalar_select %p378, %s27, 0
      %s380 = smul.addr %s379, 8
      %s381 = scalar_lea.vmem %s5, %s380
      %p382 = pneg %p165
      %p383 = pneg %p162
      %p384 = scmp.lt.s32.totalorder %s27, 0
      %s385 = scalar_select %p384, %s27, 0
      %s386 = smul.addr %s385, 8
      %s387 = scalar_lea.vmem %s6, %s386
      %p388 = pneg %p191
      %p389 = pneg %p188
      %p390 = pneg %p219
      %p391 = pneg %p216
      %p392 = scmp.lt.s32.totalorder %s26, 1
      %s393 = scalar_select %p392, %s26, 1
      %p394 = scmp.lt.s32.totalorder %s27, 0
      %s395 = scalar_select %p394, %s27, 0
      %s396 = sadd.s32 %s395, %s393
      %s397 = smul.addr %s396, 8
      %s398 = scalar_lea.vmem %s7, %s397
      %p399 = pneg %p247
      %p400 = pneg %p244
      %p401 = scmp.lt.s32.totalorder %s26, 1
      %s402 = scalar_select %p401, %s26, 1
      %p403 = scmp.lt.s32.totalorder %s27, 0
      %s404 = scalar_select %p403, %s27, 0
      %s405 = sadd.s32 %s404, %s402
      %s406 = smul.addr %s405, 8
      %s407 = scalar_lea.vmem %s8, %s406
      %p408 = pneg %p275
      %p409 = pneg %p272
      %p410 = scmp.lt.s32.totalorder %s26, 1
      %s411 = scalar_select %p410, %s26, 1
      %p412 = scmp.lt.s32.totalorder %s27, 0
      %s413 = scalar_select %p412, %s27, 0
      %s414 = sadd.s32 %s413, %s411
      %s415 = smul.addr %s414, 8
      %s416 = scalar_lea.vmem %s9, %s415
      %p417 = pneg %p303
      %p418 = pneg %p300
      %p419 = scmp.lt.s32.totalorder %s26, 1
      %s420 = scalar_select %p419, %s26, 1
      %p421 = scmp.lt.s32.totalorder %s27, 0
      %s422 = scalar_select %p421, %s27, 0
      %s423 = sadd.s32 %s422, %s420
      %s424 = smul.addr %s423, 8
      %s425 = scalar_lea.vmem %s10, %s424
      %p426 = scmp.lt.s32.totalorder %s26, 1
      %s427 = scalar_select %p426, %s26, 1
      %s428 = smul.addr %s427, 8
      %s429 = smul.addr %s428, 8
      %s430 = scalar_lea.vmem %s0, %s429
      %p431 = scmp.lt.s32.totalorder %s27, 0
      %s432 = scalar_select %p431, %s27, 0
      %s433 = smul.addr %s432, 8
      %s434 = scalar_lea.vmem %s5, %s433
      %p435 = scmp.lt.s32.totalorder %s27, 0
      %s436 = scalar_select %p435, %s27, 0
      %s437 = smul.addr %s436, 8
      %s438 = scalar_lea.vmem %s6, %s437
      %p439 = scmp.lt.s32.totalorder %s26, 1
      %s440 = scalar_select %p439, %s26, 1
      %p441 = scmp.lt.s32.totalorder %s27, 0
      %s442 = scalar_select %p441, %s27, 0
      %s443 = sadd.s32 %s442, %s440
      %s444 = smul.addr %s443, 8
      %s445 = scalar_lea.vmem %s7, %s444
      %p446 = scmp.lt.s32.totalorder %s26, 1
      %s447 = scalar_select %p446, %s26, 1
      %p448 = scmp.lt.s32.totalorder %s27, 0
      %s449 = scalar_select %p448, %s27, 0
      %s450 = sadd.s32 %s449, %s447
      %s451 = smul.addr %s450, 8
      %s452 = scalar_lea.vmem %s8, %s451
      %p453 = scmp.lt.s32.totalorder %s26, 1
      %s454 = scalar_select %p453, %s26, 1
      %p455 = scmp.lt.s32.totalorder %s27, 0
      %s456 = scalar_select %p455, %s27, 0
      %s457 = sadd.s32 %s456, %s454
      %s458 = smul.addr %s457, 8
      %s459 = scalar_lea.vmem %s9, %s458
      %p460 = scmp.lt.s32.totalorder %s26, 1
      %s461 = scalar_select %p460, %s26, 1
      %p462 = scmp.lt.s32.totalorder %s27, 0
      %s463 = scalar_select %p462, %s27, 0
      %s464 = sadd.s32 %s463, %s461
      %s465 = smul.addr %s464, 8
      %s466 = scalar_lea.vmem %s10, %s465
      %v467 = vld [vmem:[%s430] sm:$0xff]
      %v468 = vld [vmem:[%s430 + $0x8] sm:$0xff]
      %v469 = vld [vmem:[%s430 + $0x10] sm:$0xff]
      %v470 = vld [vmem:[%s430 + $0x18] sm:$0xff]
      %v471 = vld [vmem:[%s430 + $0x20] sm:$0xff]
      %v472 = vld [vmem:[%s430 + $0x28] sm:$0xff]
      %v473 = vld [vmem:[%s430 + $0x30] sm:$0xff]
      %v474 = vld [vmem:[%s1] sm:$0xff]
      %476 = vset.pattern.permute.xlu0 0
      %477 = vperm.xlu0 %476, %v474
      %v478 = vpop.permute.xlu0 %477
      %v480 = vmul.f32 %v467, %v478
      %v481 = vmul.f32 %v468, %v478
      %v482 = vmul.f32 %v469, %v478
      %v483 = vmul.f32 %v470, %v478
      %v484 = vmul.f32 %v471, %v478
      %v485 = vmul.f32 %v472, %v478
      %v486 = vmul.f32 %v473, %v478
      %v487 = vld [vmem:[%s2] sm:$0xff]
      %489 = vset.pattern.permute.xlu0 0
      %490 = vperm.xlu0 %489, %v487
      %v491 = vpop.permute.xlu0 %490
      %v493 = vadd.f32 %v480, %v491
      %v494 = vadd.f32 %v481, %v491
      %v495 = vadd.f32 %v482, %v491
      %v496 = vadd.f32 %v483, %v491
      %v497 = vadd.f32 %v484, %v491
      %v498 = vadd.f32 %v485, %v491
      %v499 = vadd.f32 %v486, %v491
      %v500 = vmax.f32 %v493, 0.0
      %v501 = vmax.f32 %v494, 0.0
      %v502 = vmax.f32 %v495, 0.0
      %v503 = vmax.f32 %v496, 0.0
      %v504 = vmax.f32 %v497, 0.0
      %v505 = vmax.f32 %v498, 0.0
      %v506 = vmax.f32 %v499, 0.0
      %v507 = vld [vmem:[%s3] sm:$0x3]
      %v509 = vperm.slane %v507, 0
      %v510 = vperm.slane %v507, 1
      %v513 = vmul.f32 %v500, %v509
      %v514 = vmul.f32 %v501, %v510
      %v515 = vmul.f32 %v502, %v509
      %v516 = vmul.f32 %v503, %v510
      %v517 = vmul.f32 %v504, %v509
      %v518 = vmul.f32 %v505, %v510
      %v519 = vmul.f32 %v506, %v509
      %v520 = vld [vmem:[%s434] sm:$0xff]
      %v521 = vld [vmem:[%s438] sm:$0xff]
      %524 = vrot.lane.b32.xlu0 %v513, 127
      %v525 = vpop.permute.xlu0 %524
      %526 = vrot.lane.b32.xlu0 %v514, 127
      %v527 = vpop.permute.xlu0 %526
      %vm528 = vcmask 1039360
      %v529 = vsel %vm528, %v525, %v527
      %533 = vrot.lane.b32.xlu0 %v517, 127
      %v534 = vpop.permute.xlu0 %533
      %535 = vrot.lane.b32.xlu0 %v518, 127
      %v536 = vpop.permute.xlu0 %535
      %v537 = vsel %vm528, %v534, %v536
      %539 = vrot.lane.b32.xlu0 %v513, 119
      %v540 = vpop.permute.xlu0 %539
      %541 = vrot.lane.b32.xlu0 %v514, 119
      %v542 = vpop.permute.xlu0 %541
      %vm543 = vcmask 973824
      %v544 = vsel %vm543, %v540, %v542
      %548 = vrot.lane.b32.xlu0 %v515, 119
      %v549 = vpop.permute.xlu0 %548
      %550 = vrot.lane.b32.xlu0 %v516, 119
      %v551 = vpop.permute.xlu0 %550
      %v552 = vsel %vm543, %v549, %v551
      %554 = vrot.lane.b32.xlu0 %v513, 118
      %v555 = vpop.permute.xlu0 %554
      %556 = vrot.lane.b32.xlu0 %v514, 118
      %v557 = vpop.permute.xlu0 %556
      %vm558 = vcmask 965632
      %v559 = vsel %vm558, %v555, %v557
      %vm561 = vcmask 588800
      %v563 = vsel %vm561, %v520, 0
      %565 = vmatpush.msra.mxu0 0.0
      %566 = vmatpush.msra.mxu0 0.0
      %567 = vmatpush.msra.mxu0 0.0
      %568 = vmatpush.msra.mxu0 0.0
      %569 = vmatpush.msra.mxu0 0.0
      %570 = vmatpush.msra.mxu0 0.0
      %571 = vmatpush.msra.mxu0 0.0
      %572 = vmatpush.msra.mxu0 %v559
      %573 = vmatpush.msra.mxu0 %v552
      %574 = vmatpush.msra.mxu0 %v544
      %575 = vmatpush.msra.mxu0 %v537
      %576 = vmatpush.msra.mxu0 %v519
      %577 = vmatpush.msra.mxu0 %v517
      %578 = vmatpush.msra.mxu0 %v529
      %579 = vmatpush.msra.mxu0 %v515
      %580 = vmatpush.msra.mxu0 %v513
      %581 = vmatmul.f32.gmra.mxu0 %v563
      %v582 = vpop.f32.mrf.mxu0
      %v583 = vadd.f32 0.0, %v582
      %584 = vdwg.mxu0
      %585 = vst [vmem:[%s445] sm:$0xff] %v583
      %v586 = vld [vmem:[%s4] sm:$0x1]
      %v588 = vperm.slane %v586, 0
      %v590 = vmul.f32 %v583, %v588
      %591 = vadd.xlane.f32.xlu0 %v590
      %v592 = vpop.xlane.xlu0 %591
      %v593 = vmul.f32 %v590, %v583
      %594 = vadd.xlane.f32.xlu0 %v593
      %v595 = vpop.xlane.xlu0 %594
      %598 = vrot.lane.b32.xlu0 %v467, 127
      %v599 = vpop.permute.xlu0 %598
      %600 = vrot.lane.b32.xlu0 %v468, 127
      %v601 = vpop.permute.xlu0 %600
      %v602 = vsel %vm528, %v599, %v601
      %606 = vrot.lane.b32.xlu0 %v471, 127
      %v607 = vpop.permute.xlu0 %606
      %608 = vrot.lane.b32.xlu0 %v472, 127
      %v609 = vpop.permute.xlu0 %608
      %v610 = vsel %vm528, %v607, %v609
      %612 = vrot.lane.b32.xlu0 %v467, 119
      %v613 = vpop.permute.xlu0 %612
      %614 = vrot.lane.b32.xlu0 %v468, 119
      %v615 = vpop.permute.xlu0 %614
      %v616 = vsel %vm543, %v613, %v615
      %620 = vrot.lane.b32.xlu0 %v469, 119
      %v621 = vpop.permute.xlu0 %620
      %622 = vrot.lane.b32.xlu0 %v470, 119
      %v623 = vpop.permute.xlu0 %622
      %v624 = vsel %vm543, %v621, %v623
      %626 = vrot.lane.b32.xlu0 %v467, 118
      %v627 = vpop.permute.xlu0 %626
      %628 = vrot.lane.b32.xlu0 %v468, 118
      %v629 = vpop.permute.xlu0 %628
      %v630 = vsel %vm558, %v627, %v629
      %v633 = vsel %vm561, %v521, 0
      %635 = vmatpush.msra.mxu0 0.0
      %636 = vmatpush.msra.mxu0 0.0
      %637 = vmatpush.msra.mxu0 0.0
      %638 = vmatpush.msra.mxu0 0.0
      %639 = vmatpush.msra.mxu0 0.0
      %640 = vmatpush.msra.mxu0 0.0
      %641 = vmatpush.msra.mxu0 0.0
      %642 = vmatpush.msra.mxu0 %v630
      %643 = vmatpush.msra.mxu0 %v624
      %644 = vmatpush.msra.mxu0 %v616
      %645 = vmatpush.msra.mxu0 %v610
      %646 = vmatpush.msra.mxu0 %v473
      %647 = vmatpush.msra.mxu0 %v471
      %648 = vmatpush.msra.mxu0 %v602
      %649 = vmatpush.msra.mxu0 %v469
      %650 = vmatpush.msra.mxu0 %v467
      %651 = vmatmul.f32.gmra.mxu0 %v633
      %v652 = vpop.f32.mrf.mxu0
      %v653 = vadd.f32 0.0, %v652
      %654 = vdwg.mxu0
      %655 = vst [vmem:[%s452] sm:$0xff] %v653
      %vm656 = vcmask 7168
      %657 = vst.msk [vmem:[%s459] sm:$0xff] %vm656, %v592
      %658 = vst.msk [vmem:[%s466] sm:$0xff] %vm656, %v595
      %p659 = scmp.lt.s32.totalorder %s26, 1
      %s660 = scalar_select %p659, %s26, 1
      %p661 = scmp.lt.s32.totalorder %s27, 0
      %s662 = scalar_select %p661, %s27, 0
      %s663 = sadd.s32 %s662, %s660
      %s664 = smul.addr %s663, 8
      %s665 = scalar_lea.vmem %s7, %s664
      %p666 = scmp.lt.s32.totalorder %s26, 1
      %s667 = scalar_select %p666, %s26, 1
      %p668 = scmp.lt.s32.totalorder %s27, 0
      %s669 = scalar_select %p668, %s27, 0
      %s670 = sadd.s32 %s669, %s667
      %s671 = smul.addr %s670, 8
      %s672 = scalar_lea.vmem %s8, %s671
      %p673 = scmp.lt.s32.totalorder %s26, 1
      %s674 = scalar_select %p673, %s26, 1
      %p675 = scmp.lt.s32.totalorder %s27, 0
      %s676 = scalar_select %p675, %s27, 0
      %s677 = sadd.s32 %s676, %s674
      %s678 = smul.addr %s677, 8
      %s679 = scalar_lea.vmem %s9, %s678
      %p680 = scmp.lt.s32.totalorder %s26, 1
      %s681 = scalar_select %p680, %s26, 1
      %p682 = scmp.lt.s32.totalorder %s27, 0
      %s683 = scalar_select %p682, %s27, 0
      %s684 = sadd.s32 %s683, %s681
      %s685 = smul.addr %s684, 8
      %s686 = scalar_lea.vmem %s10, %s685
      // Predicated region
      $region49: #{preact_block.4} parent=47 // pred_check
        %p687 = pneg %p216
      $region50: #{preact_block.4} parent=47 // pred_check_branch
        %689 = sbr.rel (%p687) target = $region52
      $region51: #{preact_block.4} parent=47 // pred_region
        _
      $region52: #{preact_block.4} parent=47 // pred_fallthru
        _
      // Predicated region
      $region53: #{preact_block.4} parent=47 // pred_check
        %p690 = pneg %p244
      $region54: #{preact_block.4} parent=47 // pred_check_branch
        %692 = sbr.rel (%p690) target = $region56
      $region55: #{preact_block.4} parent=47 // pred_region
        _
      $region56: #{preact_block.4} parent=47 // pred_fallthru
        _
      // Predicated region
      $region57: #{preact_block.4} parent=47 // pred_check
        %p693 = pneg %p272
      $region58: #{preact_block.4} parent=47 // pred_check_branch
        %695 = sbr.rel (%p693) target = $region60
      $region59: #{preact_block.4} parent=47 // pred_region
        _
      $region60: #{preact_block.4} parent=47 // pred_fallthru
        _
      // Predicated region
      $region61: #{preact_block.4} parent=47 // pred_check
        %p696 = pneg %p300
      $region62: #{preact_block.4} parent=47 // pred_check_branch
        %698 = sbr.rel (%p696) target = $region64
      $region63: #{preact_block.4} parent=47 // pred_region
        _
      $region64: #{preact_block.4} parent=47 // pred_fallthru
        _
    $region48: #{preact_block.4} parent=5 // pred_fallthru
      _
    %p699 = scmp.le.s32.totalorder 2, %s17
    // Predicated region
    $region65: #{preact_block.4} parent=5 // pred_check
      %p700 = pneg %p699
    $region66: #{preact_block.4} parent=5 // pred_check_branch
      %702 = sbr.rel (%p700) target = $region68
    $region67: #{preact_block.4} parent=5 // pred_region
      %s703 = ssub.s32 %s17, 2
      // Predicated region
      $region69: #{preact_block.4} parent=67 // pred_check
        %p704 = pneg %p222
      $region70: #{preact_block.4} parent=67 // pred_check_branch
        %706 = sbr.rel (%p704) target = $region72
      $region71: #{preact_block.4} parent=67 // pred_region
        %p707 = scmp.lt.s32.totalorder %s28, 1
        %s708 = scalar_select %p707, %s28, 1
        %p709 = scmp.lt.s32.totalorder %s29, 0
        %s710 = scalar_select %p709, %s29, 0
        %s711 = sadd.s32 %s710, %s708
        %s712 = smul.addr %s711, 8
        %s713 = scalar_lea.vmem %s7, %s712
      $region72: #{preact_block.4} parent=67 // pred_fallthru
        _
      // Predicated region
      $region73: #{preact_block.4} parent=67 // pred_check
        %p714 = pneg %p250
      $region74: #{preact_block.4} parent=67 // pred_check_branch
        %716 = sbr.rel (%p714) target = $region76
      $region75: #{preact_block.4} parent=67 // pred_region
        %p717 = scmp.lt.s32.totalorder %s28, 1
        %s718 = scalar_select %p717, %s28, 1
        %p719 = scmp.lt.s32.totalorder %s29, 0
        %s720 = scalar_select %p719, %s29, 0
        %s721 = sadd.s32 %s720, %s718
        %s722 = smul.addr %s721, 8
        %s723 = scalar_lea.vmem %s8, %s722
      $region76: #{preact_block.4} parent=67 // pred_fallthru
        _
      // Predicated region
      $region77: #{preact_block.4} parent=67 // pred_check
        %p724 = pneg %p278
      $region78: #{preact_block.4} parent=67 // pred_check_branch
        %726 = sbr.rel (%p724) target = $region80
      $region79: #{preact_block.4} parent=67 // pred_region
        %p727 = scmp.lt.s32.totalorder %s28, 1
        %s728 = scalar_select %p727, %s28, 1
        %p729 = scmp.lt.s32.totalorder %s29, 0
        %s730 = scalar_select %p729, %s29, 0
        %s731 = sadd.s32 %s730, %s728
        %s732 = smul.addr %s731, 8
        %s733 = scalar_lea.vmem %s9, %s732
      $region80: #{preact_block.4} parent=67 // pred_fallthru
        _
      // Predicated region
      $region81: #{preact_block.4} parent=67 // pred_check
        %p734 = pneg %p306
      $region82: #{preact_block.4} parent=67 // pred_check_branch
        %736 = sbr.rel (%p734) target = $region84
      $region83: #{preact_block.4} parent=67 // pred_region
        %p737 = scmp.lt.s32.totalorder %s28, 1
        %s738 = scalar_select %p737, %s28, 1
        %p739 = scmp.lt.s32.totalorder %s29, 0
        %s740 = scalar_select %p739, %s29, 0
        %s741 = sadd.s32 %s740, %s738
        %s742 = smul.addr %s741, 8
        %s743 = scalar_lea.vmem %s10, %s742
      $region84: #{preact_block.4} parent=67 // pred_fallthru
        _
    $region68: #{preact_block.4} parent=5 // pred_fallthru
      _
  $region6: #{preact_block.4} parent=0 // loop_footer
    %s21 = sadd.s32 1, %s17
  $region7: #{preact_block.4} parent=0 // loop_footer_branch
    %16 = sbr.rel target = $region3
  $region8: #{preact_block.4} parent=0 // loop_exit
    _

// kernel: preact_block.5
$region0: #{preact_block.5}
  #allocation0 [shape = 'u32[]', space=smem, size = 0x4, offset = 0x4, fixed_abs, tag = 'smem constant byte address 0x4 - core index']
  #allocation1 [shape = 'u32[72,128]{1,0:T(1,128)}', space=vmem, size = 0x9000, scoped, tag = 'internal scratch']
  %s0 = inlined_call_operand.vmem [shape: f32[2,1,8,150], index: 0, kind: input, shape index: {}]
  %s1 = inlined_call_operand.vmem [shape: f32[8,1], index: 1, kind: input, shape index: {}]
  %s2 = inlined_call_operand.vmem [shape: f32[8,1], index: 2, kind: input, shape index: {}]
  %s3 = inlined_call_operand.vmem [shape: f32[1,150], index: 3, kind: input, shape index: {}]
  %s4 = inlined_call_operand.vmem [shape: f32[8,72], index: 4, kind: input, shape index: {}]
  %s5 = inlined_call_operand.vmem [shape: f32[2,8,128], index: 5, kind: output, shape index: {}]
  %s6 = sld [smem:[#allocation0]]
  $region53: #{preact_block.5} parent=0
    _
  %s8 = ssub.s32 1, %s6
  %s9 = scalar_select 0, %s8, %s6
  loop: start=0, step=1, limit=4
  $region2: #{preact_block.5} parent=0 // loop_pre_header
    _
  $region3: #{preact_block.5} parent=0 // loop_header
    %s11 = sphi 0, %s15
    %p12 = scmp.ge.s32.totalorder %s11, 4
    %s18 = sphi 0, %s30
    %s19 = sphi 0, %s26
    %s20 = sphi 0, %s18
    %s21 = sphi 0, %s19
    %s22 = sphi 0, %s20
    %s23 = sphi 0, %s21
    %s33 = sphi 0, %s35
    %s36 = sphi 0, %s33
    %s37 = sphi 0, %s36
    %s53 = sphi 0, %s37
    %s57 = sphi 0, %s57
    %s59 = sphi 0, %s57
    %s60 = sphi 0, %s59
    %s74 = sphi 0, %s60
    %s78 = sphi 0, %s78
    %s80 = sphi 0, %s78
    %s81 = sphi 0, %s80
    %s95 = sphi 0, %s81
    %s99 = sphi 0, %s99
    %s101 = sphi 0, %s99
    %s102 = sphi 0, %s101
    %s116 = sphi 0, %s102
    %s122 = sphi 0, %s124
    %s125 = sphi 0, %s122
    %s126 = sphi 0, %s125
    %s142 = sphi 0, %s126
    %s150 = sphi 0, %s152
    %s153 = sphi 0, %s150
    %s154 = sphi 0, %s153
    %s170 = sphi 0, %s154
  $region4: #{preact_block.5} parent=0 // loop_header_branch
    %14 = sbr.rel (%p12) target = $region8
  $region5: #{preact_block.5} parent=0 // loop_body
    %s16 = ssub.s32 %s11, 1
    %s17 = ssub.s32 %s11, 2
    %s24 = sadd.s32 1, %s19
    %p25 = scmp.ge.s32.totalorder %s24, 1
    %s26 = scalar_select %p25, 0, %s24
    %s27 = sadd.s32 1, %s18
    %s28 = scalar_select %p25, %s27, %s18
    %p29 = scmp.ge.s32.totalorder %s28, 2
    %s30 = scalar_select %p29, 0, %s28
    %s31 = ssub.s32 %s18, %s30
    %p32 = scmp.eq.s32.totalorder %s31, 0
    %s34 = sadd.s32 %s33, 1
    %s35 = scalar_select %p32, %s33, %s34
    %p38 = pneg %p32
    %p39 = scmp.eq.s32.totalorder %s11, 1
    %p40 = por %p38, %p39
    %p41 = scmp.ne.s32.totalorder %s33, %s36
    %p42 = scmp.eq.s32.totalorder %s11, 0
    %p43 = por %p41, %p42
    %p44 = scmp.ne.s32.totalorder %s33, %s36
    %p45 = scmp.eq.s32.totalorder %s16, 1
    %p46 = por %p44, %p45
    %p47 = scmp.ne.s32.totalorder %s36, %s37
    %p48 = scmp.eq.s32.totalorder %s16, 0
    %p49 = por %p47, %p48
    %p50 = scmp.ne.s32.totalorder %s36, %s37
    %p51 = scmp.eq.s32.totalorder %s17, 1
    %p52 = por %p50, %p51
    %p54 = scmp.ne.s32.totalorder %s37, %s53
    %p55 = scmp.eq.s32.totalorder %s17, 0
    %p56 = por %p54, %p55
    %s58 = sadd.s32 %s57, 1
    %p61 = scmp.eq.s32.totalorder %s11, 1
    %p62 = scmp.ne.s32.totalorder %s57, %s59
    %p63 = scmp.eq.s32.totalorder %s11, 0
    %p64 = por %p62, %p63
    %p65 = scmp.ne.s32.totalorder %s57, %s59
    %p66 = scmp.eq.s32.totalorder %s16, 1
    %p67 = por %p65, %p66
    %p68 = scmp.ne.s32.totalorder %s59, %s60
    %p69 = scmp.eq.s32.totalorder %s16, 0
    %p70 = por %p68, %p69
    %p71 = scmp.ne.s32.totalorder %s59, %s60
    %p72 = scmp.eq.s32.totalorder %s17, 1
    %p73 = por %p71, %p72
    %p75 = scmp.ne.s32.totalorder %s60, %s74
    %p76 = scmp.eq.s32.totalorder %s17, 0
    %p77 = por %p75, %p76
    %s79 = sadd.s32 %s78, 1
    %p82 = scmp.eq.s32.totalorder %s11, 1
    %p83 = scmp.ne.s32.totalorder %s78, %s80
    %p84 = scmp.eq.s32.totalorder %s11, 0
    %p85 = por %p83, %p84
    %p86 = scmp.ne.s32.totalorder %s78, %s80
    %p87 = scmp.eq.s32.totalorder %s16, 1
    %p88 = por %p86, %p87
    %p89 = scmp.ne.s32.totalorder %s80, %s81
    %p90 = scmp.eq.s32.totalorder %s16, 0
    %p91 = por %p89, %p90
    %p92 = scmp.ne.s32.totalorder %s80, %s81
    %p93 = scmp.eq.s32.totalorder %s17, 1
    %p94 = por %p92, %p93
    %p96 = scmp.ne.s32.totalorder %s81, %s95
    %p97 = scmp.eq.s32.totalorder %s17, 0
    %p98 = por %p96, %p97
    %s100 = sadd.s32 %s99, 1
    %p103 = scmp.eq.s32.totalorder %s11, 1
    %p104 = scmp.ne.s32.totalorder %s99, %s101
    %p105 = scmp.eq.s32.totalorder %s11, 0
    %p106 = por %p104, %p105
    %p107 = scmp.ne.s32.totalorder %s99, %s101
    %p108 = scmp.eq.s32.totalorder %s16, 1
    %p109 = por %p107, %p108
    %p110 = scmp.ne.s32.totalorder %s101, %s102
    %p111 = scmp.eq.s32.totalorder %s16, 0
    %p112 = por %p110, %p111
    %p113 = scmp.ne.s32.totalorder %s101, %s102
    %p114 = scmp.eq.s32.totalorder %s17, 1
    %p115 = por %p113, %p114
    %p117 = scmp.ne.s32.totalorder %s102, %s116
    %p118 = scmp.eq.s32.totalorder %s17, 0
    %p119 = por %p117, %p118
    %s120 = ssub.s32 %s19, %s26
    %p121 = scmp.eq.s32.totalorder %s120, 0
    %s123 = sadd.s32 %s122, 1
    %s124 = scalar_select %p121, %s122, %s123
    %p127 = pneg %p121
    %p128 = scmp.eq.s32.totalorder %s11, 1
    %p129 = por %p127, %p128
    %p130 = scmp.ne.s32.totalorder %s122, %s125
    %p131 = scmp.eq.s32.totalorder %s11, 0
    %p132 = por %p130, %p131
    %p133 = scmp.ne.s32.totalorder %s122, %s125
    %p134 = scmp.eq.s32.totalorder %s16, 1
    %p135 = por %p133, %p134
    %p136 = scmp.ne.s32.totalorder %s125, %s126
    %p137 = scmp.eq.s32.totalorder %s16, 0
    %p138 = por %p136, %p137
    %p139 = scmp.ne.s32.totalorder %s125, %s126
    %p140 = scmp.eq.s32.totalorder %s17, 1
    %p141 = por %p139, %p140
    %p143 = scmp.ne.s32.totalorder %s126, %s142
    %p144 = scmp.eq.s32.totalorder %s17, 0
    %p145 = por %p143, %p144
    %s146 = ssub.s32 %s18, %s30
    %s147 = ssub.s32 %s19, %s26
    %s148 = sor.u32 %s146, %s147
    %p149 = scmp.eq.s32.totalorder %s148, 0
    %s151 = sadd.s32 %s150, 1
    %s152 = scalar_select %p149, %s150, %s151
    %p155 = pneg %p149
    %p156 = scmp.eq.s32.totalorder %s11, 1
    %p157 = por %p155, %p156
    %p158 = scmp.ne.s32.totalorder %s150, %s153
    %p159 = scmp.eq.s32.totalorder %s11, 0
    %p160 = por %p158, %p159
    %p161 = scmp.ne.s32.totalorder %s150, %s153
    %p162 = scmp.eq.s32.totalorder %s16, 1
    %p163 = por %p161, %p162
    %p164 = scmp.ne.s32.totalorder %s153, %s154
    %p165 = scmp.eq.s32.totalorder %s16, 0
    %p166 = por %p164, %p165
    %p167 = scmp.ne.s32.totalorder %s153, %s154
    %p168 = scmp.eq.s32.totalorder %s17, 1
    %p169 = por %p167, %p168
    %p171 = scmp.ne.s32.totalorder %s154, %s170
    %p172 = scmp.eq.s32.totalorder %s17, 0
    %p173 = por %p171, %p172
    %p174 = scmp.le.s32.totalorder 1, %s11
    %p175 = scmp.lt.s32.totalorder %s11, 3
    %p176 = pnand %p174, %p175
    %p177 = pneg %p176
    // Predicated region
    $region9: #{preact_block.5} parent=5 // pred_check
      _
    $region10: #{preact_block.5} parent=5 // pred_check_branch
      %179 = sbr.rel (%p176) target = $region12
    $region11: #{preact_block.5} parent=5 // pred_region
      %s180 = ssub.s32 %s11, 1
      // Predicated region
      $region13: #{preact_block.5} parent=11 // pred_check
        %p181 = pneg %p70
      $region14: #{preact_block.5} parent=11 // pred_check_branch
        %183 = sbr.rel (%p181) target = $region16
      $region15: #{preact_block.5} parent=11 // pred_region
        _
      $region16: #{preact_block.5} parent=11 // pred_fallthru
        _
      // Predicated region
      $region17: #{preact_block.5} parent=11 // pred_check
        %p184 = pneg %p91
      $region18: #{preact_block.5} parent=11 // pred_check_branch
        %186 = sbr.rel (%p184) target = $region20
      $region19: #{preact_block.5} parent=11 // pred_region
        _
      $region20: #{preact_block.5} parent=11 // pred_fallthru
        _
      // Predicated region
      $region21: #{preact_block.5} parent=11 // pred_check
        %p187 = pneg %p112
      $region22: #{preact_block.5} parent=11 // pred_check_branch
        %189 = sbr.rel (%p187) target = $region24
      $region23: #{preact_block.5} parent=11 // pred_region
        _
      $region24: #{preact_block.5} parent=11 // pred_fallthru
        _
      // Predicated region
      $region25: #{preact_block.5} parent=11 // pred_check
        %p190 = pneg %p138
      $region26: #{preact_block.5} parent=11 // pred_check_branch
        %192 = sbr.rel (%p190) target = $region28
      $region27: #{preact_block.5} parent=11 // pred_region
        %p193 = scmp.lt.s32.totalorder %s21, 0
        %s194 = scalar_select %p193, %s21, 0
        %s195 = smul.addr %s194, 8
        %s196 = scalar_lea.vmem %s4, %s195
      $region28: #{preact_block.5} parent=11 // pred_fallthru
        _
    $region12: #{preact_block.5} parent=5 // pred_fallthru
      _
    %p197 = scmp.lt.s32.totalorder %s11, 2
    // Predicated region
    $region29: #{preact_block.5} parent=5 // pred_check
      %p198 = pneg %p197
    $region30: #{preact_block.5} parent=5 // pred_check_branch
      %200 = sbr.rel (%p198) target = $region32
    $region31: #{preact_block.5} parent=5 // pred_region
      // Predicated region
      $region33: #{preact_block.5} parent=31 // pred_check
        %p201 = pneg %p43
      $region34: #{preact_block.5} parent=31 // pred_check_branch
        %203 = sbr.rel (%p201) target = $region36
      $region35: #{preact_block.5} parent=31 // pred_region
        %p204 = scmp.lt.s32.totalorder %s18, 1
        %s205 = scalar_select %p204, %s18, 1
        %s206 = smul.addr %s205, 2
        %s207 = smul.addr %s206, 8
        %s208 = scalar_lea.vmem %s0, %s207
      $region36: #{preact_block.5} parent=31 // pred_fallthru
        _
    $region32: #{preact_block.5} parent=5 // pred_fallthru
      _
    %p209 = scmp.le.s32.totalorder 1, %s11
    %p210 = scmp.lt.s32.totalorder %s11, 3
    %p211 = pnand %p209, %p210
    %p212 = pneg %p211
    // Predicated region
    $region37: #{preact_block.5} parent=5 // pred_check
      _
    $region38: #{preact_block.5} parent=5 // pred_check_branch
      %214 = sbr.rel (%p211) target = $region40
    $region39: #{preact_block.5} parent=5 // pred_region
      %s215 = ssub.s32 %s11, 1
      %p216 = scmp.lt.s32.totalorder %s20, 1
      %s217 = scalar_select %p216, %s20, 1
      %s218 = smul.addr %s217, 2
      %s219 = smul.addr %s218, 8
      %s220 = scalar_lea.vmem %s0, %s219
      %p221 = pneg %p49
      %p222 = pneg %p46
      %p223 = pneg %p70
      %p224 = pneg %p67
      %p225 = pneg %p91
      %p226 = pneg %p88
      %p227 = pneg %p112
      %p228 = pneg %p109
      %p229 = scmp.lt.s32.totalorder %s21, 0
      %s230 = scalar_select %p229, %s21, 0
      %s231 = smul.addr %s230, 8
      %s232 = scalar_lea.vmem %s4, %s231
      %p233 = pneg %p138
      %p234 = pneg %p135
      %p235 = pneg %p166
      %p236 = pneg %p163
      %p237 = scmp.lt.s32.totalorder %s20, 1
      %s238 = scalar_select %p237, %s20, 1
      %p239 = scmp.lt.s32.totalorder %s21, 0
      %s240 = scalar_select %p239, %s21, 0
      %s241 = sadd.s32 %s240, %s238
      %s242 = smul.addr %s241, 8
      %s243 = scalar_lea.vmem %s5, %s242
      %p244 = scmp.lt.s32.totalorder %s20, 1
      %s245 = scalar_select %p244, %s20, 1
      %s246 = smul.addr %s245, 2
      %s247 = smul.addr %s246, 8
      %s248 = scalar_lea.vmem %s0, %s247
      %p249 = scmp.lt.s32.totalorder %s21, 0
      %s250 = scalar_select %p249, %s21, 0
      %s251 = smul.addr %s250, 8
      %s252 = scalar_lea.vmem %s4, %s251
      %p253 = scmp.lt.s32.totalorder %s20, 1
      %s254 = scalar_select %p253, %s20, 1
      %p255 = scmp.lt.s32.totalorder %s21, 0
      %s256 = scalar_select %p255, %s21, 0
      %s257 = sadd.s32 %s256, %s254
      %s258 = smul.addr %s257, 8
      %s259 = scalar_lea.vmem %s5, %s258
      %v260 = vld [vmem:[%s248] sm:$0xff]
      %v261 = vld [vmem:[%s248 + $0x8] sm:$0xff]
      %v262 = vld [vmem:[%s1] sm:$0xff]
      %264 = vset.pattern.permute.xlu0 0
      %265 = vperm.xlu0 %264, %v262
      %v266 = vpop.permute.xlu0 %265
      %v268 = vmul.f32 %v260, %v266
      %v269 = vmul.f32 %v261, %v266
      %v270 = vld [vmem:[%s2] sm:$0xff]
      %272 = vset.pattern.permute.xlu0 0
      %273 = vperm.xlu0 %272, %v270
      %v274 = vpop.permute.xlu0 %273
      %v276 = vadd.f32 %v268, %v274
      %v277 = vadd.f32 %v269, %v274
      %v278 = vmax.f32 %v276, 0.0
      %v279 = vmax.f32 %v277, 0.0
      %v280 = vld [vmem:[%s3] sm:$0x3]
      %v282 = vperm.slane %v280, 0
      %v283 = vperm.slane %v280, 1
      %v286 = vmul.f32 %v278, %v282
      %v287 = vmul.f32 %v279, %v283
      %v288 = vld [vmem:[%s252] sm:$0xff]
      %291 = vrot.lane.b32.xlu0 %v286, 127
      %v292 = vpop.permute.xlu0 %291
      %293 = vrot.lane.b32.xlu0 %v287, 127
      %v294 = vpop.permute.xlu0 %293
      %vm295 = vcmask 1039360
      %v296 = vsel %vm295, %v292, %v294
      %298 = vrot.lane.b32.xlu0 %v286, 126
      %v299 = vpop.permute.xlu0 %298
      %300 = vrot.lane.b32.xlu0 %v287, 126
      %v301 = vpop.permute.xlu0 %300
      %vm302 = vcmask 1031168
      %v303 = vsel %vm302, %v299, %v301
      %305 = vrot.lane.b32.xlu0 %v286, 118
      %v306 = vpop.permute.xlu0 %305
      %307 = vrot.lane.b32.xlu0 %v287, 118
      %v308 = vpop.permute.xlu0 %307
      %vm309 = vcmask 965632
      %v310 = vsel %vm309, %v306, %v308
      %312 = vrot.lane.b32.xlu0 %v286, 117
      %v313 = vpop.permute.xlu0 %312
      %314 = vrot.lane.b32.xlu0 %v287, 117
      %v315 = vpop.permute.xlu0 %314
      %vm316 = vcmask 957440
      %v317 = vsel %vm316, %v313, %v315
      %319 = vrot.lane.b32.xlu0 %v286, 116
      %v320 = vpop.permute.xlu0 %319
      %321 = vrot.lane.b32.xlu0 %v287, 116
      %v322 = vpop.permute.xlu0 %321
      %vm323 = vcmask 949248
      %v324 = vsel %vm323, %v320, %v322
      %326 = vrot.lane.b32.xlu0 %v286, 108
      %v327 = vpop.permute.xlu0 %326
      %328 = vrot.lane.b32.xlu0 %v287, 108
      %v329 = vpop.permute.xlu0 %328
      %vm330 = vcmask 883712
      %v331 = vsel %vm330, %v327, %v329
      %333 = vrot.lane.b32.xlu0 %v286, 107
      %v334 = vpop.permute.xlu0 %333
      %335 = vrot.lane.b32.xlu0 %v287, 107
      %v336 = vpop.permute.xlu0 %335
      %vm337 = vcmask 875520
      %v338 = vsel %vm337, %v334, %v336
      %340 = vrot.lane.b32.xlu0 %v286, 106
      %v341 = vpop.permute.xlu0 %340
      %342 = vrot.lane.b32.xlu0 %v287, 106
      %v343 = vpop.permute.xlu0 %342
      %vm344 = vcmask 867328
      %v345 = vsel %vm344, %v341, %v343
      %vm347 = vcmask 588800
      %v349 = vsel %vm347, %v288, 0
      %351 = vmatpush.msra.mxu0 0.0
      %352 = vmatpush.msra.mxu0 0.0
      %353 = vmatpush.msra.mxu0 0.0
      %354 = vmatpush.msra.mxu0 0.0
      %355 = vmatpush.msra.mxu0 0.0
      %356 = vmatpush.msra.mxu0 0.0
      %357 = vmatpush.msra.mxu0 0.0
      %358 = vmatpush.msra.mxu0 %v345
      %359 = vmatpush.msra.mxu0 %v338
      %360 = vmatpush.msra.mxu0 %v331
      %361 = vmatpush.msra.mxu0 %v324
      %362 = vmatpush.msra.mxu0 %v317
      %363 = vmatpush.msra.mxu0 %v310
      %364 = vmatpush.msra.mxu0 %v303
      %365 = vmatpush.msra.mxu0 %v296
      %366 = vmatpush.msra.mxu0 %v286
      %367 = vmatmul.f32.gmra.mxu0 %v349
      %v368 = vpop.f32.mrf.mxu0
      %v369 = vadd.f32 0.0, %v368
      %370 = vdwg.mxu0
      %371 = vst [vmem:[%s259] sm:$0xff] %v369
      %p372 = scmp.lt.s32.totalorder %s20, 1
      %s373 = scalar_select %p372, %s20, 1
      %p374 = scmp.lt.s32.totalorder %s21, 0
      %s375 = scalar_select %p374, %s21, 0
      %s376 = sadd.s32 %s375, %s373
      %s377 = smul.addr %s376, 8
      %s378 = scalar_lea.vmem %s5, %s377
      // Predicated region
      $region41: #{preact_block.5} parent=39 // pred_check
        %p379 = pneg %p163
      $region42: #{preact_block.5} parent=39 // pred_check_branch
        %381 = sbr.rel (%p379) target = $region44
      $region43: #{preact_block.5} parent=39 // pred_region
        _
      $region44: #{preact_block.5} parent=39 // pred_fallthru
        _
    $region40: #{preact_block.5} parent=5 // pred_fallthru
      _
    %p382 = scmp.le.s32.totalorder 2, %s11
    // Predicated region
    $region45: #{preact_block.5} parent=5 // pred_check
      %p383 = pneg %p382
    $region46: #{preact_block.5} parent=5 // pred_check_branch
      %385 = sbr.rel (%p383) target = $region48
    $region47: #{preact_block.5} parent=5 // pred_region
      %s386 = ssub.s32 %s11, 2
      // Predicated region
      $region49: #{preact_block.5} parent=47 // pred_check
        %p387 = pneg %p169
      $region50: #{preact_block.5} parent=47 // pred_check_branch
        %389 = sbr.rel (%p387) target = $region52
      $region51: #{preact_block.5} parent=47 // pred_region
        %p390 = scmp.lt.s32.totalorder %s22, 1
        %s391 = scalar_select %p390, %s22, 1
        %p392 = scmp.lt.s32.totalorder %s23, 0
        %s393 = scalar_select %p392, %s23, 0
        %s394 = sadd.s32 %s393, %s391
        %s395 = smul.addr %s394, 8
        %s396 = scalar_lea.vmem %s5, %s395
      $region52: #{preact_block.5} parent=47 // pred_fallthru
        _
    $region48: #{preact_block.5} parent=5 // pred_fallthru
      _
  $region6: #{preact_block.5} parent=0 // loop_footer
    %s15 = sadd.s32 1, %s11
  $region7: #{preact_block.5} parent=0 // loop_footer_branch
    %10 = sbr.rel target = $region3
  $region8: #{preact_block.5} parent=0 // loop_exit
    _

</llo_original>
